<compile_context>
chip_gen: v7x
topology: tpu7x:2x2x1
jax: 0.10.0
libtpu: 0.0.40
codegen_flags: <defaults>
</compile_context>

<pallas_src>
import jax
import jax.numpy as jnp
from jax.experimental import pallas as pl
from jax.experimental.pallas import tpu as pltpu

F32 = jnp.float32
BF16 = jnp.bfloat16
LN_EPS = 1e-5
D_MODEL = 128
D_FF = 256
HP = 128          # lane width every fused head weight is zero-padded to


# ---------------------------------------------------------------------------
# Host-side parameter folding / packing
# ---------------------------------------------------------------------------

def _round(n, m):
    return ((n + m - 1) // m) * m


def _pad_to(a, rows, cols):
    out = jnp.zeros((rows, cols), F32)
    return out.at[:a.shape[0], :a.shape[1]].set(a.astype(F32))


def _pack_matrix_slab(entries, dtype, align):
    """Pack equal-width 2-D matrices into one slab.  Every segment starts at an
    `align`-multiple row offset (align=16 keeps bf16 segments tile aligned)."""
    width = int(entries[0][1].shape[1])
    offs, total = {}, 0
    for name, a in entries:
        assert a.ndim == 2 and a.shape[1] == width, (name, a.shape, width)
        offs[name] = (total, int(a.shape[0]))
        total += _round(int(a.shape[0]), align)
    slab = jnp.zeros((_round(total, align), width), F32)
    for name, a in entries:
        o, r = offs[name]
        slab = slab.at[o:o + r, :].set(a.astype(F32))
    return slab.astype(dtype), offs


def _pack_vector_slab(entries, width=256, align=8):
    """f32 slab for biases / LN params / prenet rows.  Kept f32 so every VPU
    add / LN stays f32 (v5e has no bf16 VPU/EUP); narrow rows are lane-padded
    and sliced back to their true width inside the kernel."""
    offs, total = {}, 0
    for name, a in entries:
        assert a.ndim == 2 and a.shape[1] <= width, (name, a.shape)
        offs[name] = (total, int(a.shape[0]), int(a.shape[1]))
        total += _round(int(a.shape[0]), align)
    slab = jnp.zeros((max(_round(total, 8), 8), width), F32)
    for name, a in entries:
        o, r, c = offs[name]
        slab = slab.at[o:o + r, :c].set(a.astype(F32))
    return slab, offs


def pack_params(p, state_dim, hidden, out_dim, weight_dtype=BF16):
    """Fold the linear sub-graphs, fuse the two dueling heads, pad everything to
    128 lanes, and pack into two bf16 matrix slabs + one f32 vector slab."""
    H, OD = hidden, out_dim
    IN_W = _round(state_dim + 2, 16)         # packed [state | action | 0] width
    assert 4 * H <= HP and 2 * OD <= HP and IN_W <= HP

    # attention: fold value+output projections:  attn = x @ (Wv Wo) + (bv Wo + bo)
    WVO = p['wv'] @ p['wo']
    BVO = p['bv'] @ p['wo'] + p['bo']

    # fold LayerNorm2's affine into pred_layer's first linear
    P1_W = p['p1_w'] * p['ln2_g'].reshape(-1, 1)
    P1_B = p['p1_b'] + p['ln2_b'] @ p['p1_w']

    # head entry: split linear1/linear3 into the state part and the sa_out part,
    # and fold pred_layer's final 128->2 projection:
    #   sa_out @ Wa = s @ (p4_w Wa) + p4_b Wa
    l1_ws, l1_wa = p['l1_w'][:state_dim], p['l1_w'][state_dim:]
    l3_ws, l3_wa = p['l3_w'][:state_dim], p['l3_w'][state_dim:]
    L1_W_IN = jnp.zeros((IN_W, HP), F32)
    L1_W_IN = (L1_W_IN.at[:state_dim, :H].set(l1_ws.astype(F32))
                      .at[:state_dim, H:2 * H].set(l3_ws.astype(F32)))
    L1_W_S = _pad_to(jnp.concatenate([p['p4_w'] @ l1_wa, p['p4_w'] @ l3_wa], 1),
                     D_MODEL, HP)
    L1_B = _pad_to(jnp.concatenate([p['l1_b'] + p['p4_b'] @ l1_wa,
                                    p['l3_b'] + p['p4_b'] @ l3_wa], 1), 1, HP)

    # linear2 / linear4 as one block-diagonal 128x128
    L2_W = jnp.zeros((HP, HP), F32)
    L2_W = L2_W.at[:H, :H].set(p['l2_w']).at[H:2 * H, H:2 * H].set(p['l4_w'])
    L2_B = _pad_to(jnp.concatenate([p['l2_b'], p['l4_b']], 1), 1, HP)

    # adv/val hidden layers of both heads fused into one 128x128 matmul
    AV_W = jnp.zeros((HP, HP), F32)
    AV_W = (AV_W.at[:H, 0:H].set(p['a1_w']).at[:H, H:2 * H].set(p['v1_w'])
                .at[H:2 * H, 2 * H:3 * H].set(p['a3_w'])
                .at[H:2 * H, 3 * H:4 * H].set(p['v3_w']))
    AV_B = _pad_to(jnp.concatenate([p['a1_b'], p['v1_b'],
                                    p['a3_b'], p['v3_b']], 1), 1, HP)

    # dueling tail fold (exact):  Q = adv @ (I - 11ᵀ/OD) + val 1ᵀ is linear in
    # the adv/val hidden activations -> fold adv2/val2 (and adv4/val4) plus the
    # mean-subtract/combine into ONE matmul whose output lanes are [Q1|Q2|0pad].
    C = jnp.eye(OD, dtype=F32) - jnp.full((OD, OD), 1.0 / OD, F32)
    ones_row = jnp.ones((1, OD), F32)
    FINQ_W = jnp.zeros((HP, HP), F32)
    FINQ_W = (FINQ_W.at[0:H, 0:OD].set(p['a2_w'] @ C)
                    .at[H:2 * H, 0:OD].set(p['v2_w'] @ ones_row)
                    .at[2 * H:3 * H, OD:2 * OD].set(p['a4_w'] @ C)
                    .at[3 * H:4 * H, OD:2 * OD].set(p['v4_w'] @ ones_row))
    FINQ_B = jnp.zeros((1, HP), F32)
    FINQ_B = (FINQ_B.at[:, 0:OD].set(p['a2_b'] @ C + p['v2_b'])
                    .at[:, OD:2 * OD].set(p['a4_b'] @ C + p['v4_b']))

    w128, off128 = _pack_matrix_slab([
        ('wvo', WVO), ('ff_w2', p['ff_w2']), ('p1_w', P1_W), ('p3_w', p['p3_w']),
        ('l1_w_in', L1_W_IN), ('l1_w_s', L1_W_S), ('l2_w', L2_W),
        ('av_w', AV_W), ('finq_w', FINQ_W),
    ], weight_dtype, align=16)
    w256, off256 = _pack_matrix_slab([
        ('ff_w1', p['ff_w1']), ('p2_w', p['p2_w']),
    ], weight_dtype, align=16)
    vec, offv = _pack_vector_slab([
        ('prenet_w', p['prenet_w']), ('prenet_b', p['prenet_b']), ('bvo', BVO),
        ('ln1_g', p['ln1_g']), ('ln1_b', p['ln1_b']),
        ('ff_b1', p['ff_b1']), ('ff_b2', p['ff_b2']),
        ('p1_b', P1_B), ('p2_b', p['p2_b']), ('p3_b', p['p3_b']),
        ('l1_b', L1_B), ('l2_b', L2_B), ('av_b', AV_B), ('finq_b', FINQ_B),
    ])
    return dict(w128=w128, w256=w256, vec=vec,
                off128=off128, off256=off256, offv=offv,
                state_dim=state_dim, in_w=IN_W, out_dim=out_dim)


# ---------------------------------------------------------------------------
# Pallas kernel
# ---------------------------------------------------------------------------

def _make_kernel(off128, off256, offv, state_dim):
    SD = state_dim

    def kernel(inp_ref, w128_ref, w256_ref, vec_ref, out_ref):
        def w128(name):
            o, r = off128[name]
            return w128_ref[o:o + r, :]            # static slice at point of use

        def w256(name):
            o, r = off256[name]
            return w256_ref[o:o + r, :]

        def vec(name):                             # f32 bias / LN / prenet rows
            o, r, c = offv[name]
            return vec_ref[o:o + r, :c]

        def relu(x):
            return jnp.maximum(x, 0.0)

        def mm(x, w):
            # MXU matmul; weights may be bf16 -> cast the activation operand,
            # accumulate f32.  All VPU / LN / ReLU math stays f32 (v5e-safe).
            return jnp.dot(x.astype(w.dtype), w, preferred_element_type=F32)

        def ln(x):                                 # LayerNorm, no affine
            mu = jnp.mean(x, axis=-1, keepdims=True)
            var = jnp.mean(jnp.square(x - mu), axis=-1, keepdims=True)
            return (x - mu) * jax.lax.rsqrt(var + LN_EPS)

        inp = inp_ref[...].astype(F32)             # (B, 32): [state | action | 0]

        # prenet: K=2 contraction as two VPU rank-1 updates (no MXU fill/drain)
        pw = vec('prenet_w')                       # (2, 128)
        x = (inp[:, SD:SD + 1] * pw[0:1, :]
             + inp[:, SD + 1:SD + 2] * pw[1:2, :] + vec('prenet_b'))

        # TransformerEncoderLayer (post-norm), seq_len == 1, eval mode.
        # Wv@Wo folded on the host -> single 128x128 matmul for the attention.
        x = ln(x + mm(x, w128('wvo')) + vec('bvo')) * vec('ln1_g') + vec('ln1_b')
        h = relu(mm(x, w256('ff_w1')) + vec('ff_b1'))
        x = ln(x + mm(h, w128('ff_w2')) + vec('ff_b2'))   # LN2 affine folded into p1

        # pred_layer (its final 128->2 projection is folded into the heads)
        s = relu(mm(x, w128('p1_w')) + vec('p1_b'))
        s = relu(mm(s, w256('p2_w')) + vec('p2_b'))
        s = relu(mm(s, w128('p3_w')) + vec('p3_b'))

        # fused dueling heads: every matmul is 128-lane dense.
        # TODO(synk): on v6e/v7x (256-deep MXU) merge the two entry dots into one
        # K=160 matmul by staging [inp | s] in a VMEM scratch; neutral on v5e.
        q = relu(mm(inp, w128('l1_w_in')) + mm(s, w128('l1_w_s')) + vec('l1_b'))
        q = relu(mm(q, w128('l2_w')) + vec('l2_b'))
        av = relu(mm(q, w128('av_w')) + vec('av_b'))

        # dueling combine (val + adv - mean(adv), both heads) folded into FINQ:
        # one matmul + one unmasked lane-dense (B, 128) store; lanes [Q1|Q2|0].
        out_ref[...] = (mm(av, w128('finq_w')) + vec('finq_b')).astype(out_ref.dtype)

    return kernel


def critic_forward(state, action, packed):
    B = state.shape[0]
    sd, in_w, od = packed['state_dim'], packed['in_w'], packed['out_dim']
    # single packed input DMA: [state | action | zero pad] -> sublane-aligned K
    inp = (jnp.zeros((B, in_w), F32)
           .at[:, :sd].set(state.astype(F32))
           .at[:, sd:sd + 2].set(action.astype(F32)))
    vmem = pl.BlockSpec(memory_space=pltpu.MemorySpace.VMEM)
    # TODO(synk): for training-scale batches add grid=(pl.cdiv(B, 256),) over the
    # batch with dimension_semantics=("parallel",) (uses both v7x TensorCores and
    # amortizes per-step overhead); at B=2 a grid-less call wins.
    out = pl.pallas_call(
        _make_kernel(packed['off128'], packed['off256'], packed['offv'], sd),
        out_shape=jax.ShapeDtypeStruct((B, 128), F32),
        in_specs=[vmem, vmem, vmem, vmem],
        out_specs=vmem,
    )(inp, packed['w128'], packed['w256'], packed['vec'])
    return out[:, :od], out[:, od:2 * od]


# ---------------------------------------------------------------------------
# Raw-parameter init (mirrors the PyTorch layer structure) and a plain-JAX
# reference of the original, unfused math — used only for the correctness check.
# ---------------------------------------------------------------------------

def init_params(key, state_dim, hidden, out_dim, init_w=0.003):
    n_obs = state_dim + 2
    keys = iter(jax.random.split(key, 64))

    def u(shape, scale):
        return jax.random.uniform(next(keys), shape, F32, -scale, scale)

    def lin(in_f, out_f, scale=None):
        s = scale if scale is not None else 1.0 / float(in_f) ** 0.5
        return u((in_f, out_f), s), u((1, out_f), s)

    p = {}
    p['prenet_w'], p['prenet_b'] = lin(2, D_MODEL)
    p['wv'], p['bv'] = lin(D_MODEL, D_MODEL)     # attention value projection
    p['wo'], p['bo'] = lin(D_MODEL, D_MODEL)     # attention output projection
    p['ln1_g'] = jnp.ones((1, D_MODEL), F32)
    p['ln1_b'] = jnp.zeros((1, D_MODEL), F32)
    p['ff_w1'], p['ff_b1'] = lin(D_MODEL, D_FF)
    p['ff_w2'], p['ff_b2'] = lin(D_FF, D_MODEL)
    p['ln2_g'] = jnp.ones((1, D_MODEL), F32)
    p['ln2_b'] = jnp.zeros((1, D_MODEL), F32)
    p['p1_w'], p['p1_b'] = lin(D_MODEL, 128)
    p['p2_w'], p['p2_b'] = lin(128, 256)
    p['p3_w'], p['p3_b'] = lin(256, 128)
    p['p4_w'], p['p4_b'] = lin(128, 2)
    p['l1_w'], p['l1_b'] = lin(n_obs, hidden)
    p['l2_w'], p['l2_b'] = lin(hidden, hidden)
    p['a1_w'], p['a1_b'] = lin(hidden, hidden)
    p['a2_w'], p['a2_b'] = lin(hidden, out_dim, init_w)
    p['v1_w'], p['v1_b'] = lin(hidden, hidden)
    p['v2_w'], p['v2_b'] = lin(hidden, 1, init_w)
    p['l3_w'], p['l3_b'] = lin(n_obs, hidden)
    p['l4_w'], p['l4_b'] = lin(hidden, hidden)
    p['a3_w'], p['a3_b'] = lin(hidden, hidden)
    p['a4_w'], p['a4_b'] = lin(hidden, out_dim)
    p['v3_w'], p['v3_b'] = lin(hidden, hidden)
    p['v4_w'], p['v4_b'] = lin(hidden, 1)
    return p


def reference_forward(state, action, p):
    def mm(x, w, b):
        return x @ w + b

    def relu(x):
        return jnp.maximum(x, 0.0)

    def layernorm(x, g, b):
        mu = jnp.mean(x, axis=-1, keepdims=True)
        var = jnp.mean(jnp.square(x - mu), axis=-1, keepdims=True)
        return (x - mu) * jax.lax.rsqrt(var + LN_EPS) * g + b

    x = mm(action, p['prenet_w'], p['prenet_b'])
    attn = mm(mm(x, p['wv'], p['bv']), p['wo'], p['bo'])
    x = layernorm(x + attn, p['ln1_g'], p['ln1_b'])
    h = relu(mm(x, p['ff_w1'], p['ff_b1']))
    x = layernorm(x + mm(h, p['ff_w2'], p['ff_b2']), p['ln2_g'], p['ln2_b'])
    s = relu(mm(x, p['p1_w'], p['p1_b']))
    s = relu(mm(s, p['p2_w'], p['p2_b']))
    s = relu(mm(s, p['p3_w'], p['p3_b']))
    sa_out = mm(s, p['p4_w'], p['p4_b'])
    sa = jnp.concatenate([state, sa_out], axis=1)

    def head(lw, lb, l2w, l2b, aw1, ab1, aw2, ab2, vw1, vb1, vw2, vb2):
        q = relu(mm(sa, lw, lb))
        q = relu(mm(q, l2w, l2b))
        adv = mm(relu(mm(q, aw1, ab1)), aw2, ab2)
        val = mm(relu(mm(q, vw1, vb1)), vw2, vb2)
        return val + adv - jnp.mean(adv, axis=1, keepdims=True)

    q1 = head(p['l1_w'], p['l1_b'], p['l2_w'], p['l2_b'], p['a1_w'], p['a1_b'],
              p['a2_w'], p['a2_b'], p['v1_w'], p['v1_b'], p['v2_w'], p['v2_b'])
    q2 = head(p['l3_w'], p['l3_b'], p['l4_w'], p['l4_b'], p['a3_w'], p['a3_b'],
              p['a4_w'], p['a4_b'], p['v3_w'], p['v3_b'], p['v4_w'], p['v4_b'])
    return q1, q2


if __name__ == "__main__":
    key = jax.random.PRNGKey(0)
    B, state_dim, hidden, out_dim = 2, 30, 32, 4   # n_obs = state_dim + 2 = 32
    k_state, k_action, k_params = jax.random.split(key, 3)

    state = jax.random.normal(k_state, (B, state_dim), F32)
    action = jax.random.normal(k_action, (B, 2), F32)
    raw = init_params(k_params, state_dim, hidden, out_dim)

    r1, r2 = reference_forward(state, action, raw)   # original unfused math

    # 1) f32 weight slabs: strict check that every host-side fold is exact.
    packed_f32 = pack_params(raw, state_dim, hidden, out_dim, weight_dtype=F32)
    q1, q2 = critic_forward(state, action, packed_f32)
    jax.block_until_ready((q1, q2))
    assert q1.shape == (B, out_dim) and q2.shape == (B, out_dim)
    assert jnp.allclose(q1, r1, atol=1e-4, rtol=1e-4)
    assert jnp.allclose(q2, r2, atol=1e-4, rtol=1e-4)

    # 2) bf16 weight slabs (production path): halved weight DMA + native MXU
    #    bf16 rate; tolerance relaxed for the bf16 weight rounding.
    packed_bf16 = pack_params(raw, state_dim, hidden, out_dim)
    q1b, q2b = critic_forward(state, action, packed_bf16)
    jax.block_until_ready((q1b, q2b))
    assert jnp.allclose(q1b, r1, atol=3e-3, rtol=3e-2)
    assert jnp.allclose(q2b, r2, atol=3e-3, rtol=3e-2)

    print("KERNEL_OK")
</pallas_src>

<mosaic_0001>
module attributes {stable_mosaic.version = 11 : i64} {
  func.func @kernel(%arg0: memref<2x32xf32, #tpu.memory_space<vmem>>, %arg1: memref<1312x128xf32, #tpu.memory_space<vmem>>, %arg2: memref<256x256xf32, #tpu.memory_space<vmem>>, %arg3: memref<112x256xf32, #tpu.memory_space<vmem>>, %arg4: memref<2x128xf32, #tpu.memory_space<vmem>>) attributes {dimension_semantics = [], scalar_prefetch = 0 : i64, scratch_operands = 0 : i64, tpu.core_type = #tpu.core_type<tc>} {
    %c0 = arith.constant 0 : index
    %c0_0 = arith.constant 0 : index
    %0 = vector.load %arg0[%c0, %c0_0] : memref<2x32xf32, #tpu.memory_space<vmem>>, vector<2x32xf32>
    %c0_1 = arith.constant 0 : index
    %c0_2 = arith.constant 0 : index
    %1 = vector.load %arg3[%c0_1, %c0_2] : memref<112x256xf32, #tpu.memory_space<vmem>>, vector<2x128xf32>
    %2 = vector.extract_strided_slice %0 {offsets = [0, 30], sizes = [2, 1], strides = [1, 1]} : vector<2x32xf32> to vector<2x1xf32>
    %3 = vector.extract_strided_slice %1 {offsets = [0, 0], sizes = [1, 128], strides = [1, 1]} : vector<2x128xf32> to vector<1x128xf32>
    %4 = vector.broadcast %2 : vector<2x1xf32> to vector<2x128xf32>
    %5 = vector.broadcast %3 : vector<1x128xf32> to vector<2x128xf32>
    %6 = arith.mulf %4, %5 : vector<2x128xf32>
    %7 = vector.extract_strided_slice %0 {offsets = [0, 31], sizes = [2, 1], strides = [1, 1]} : vector<2x32xf32> to vector<2x1xf32>
    %8 = vector.extract_strided_slice %1 {offsets = [1, 0], sizes = [1, 128], strides = [1, 1]} : vector<2x128xf32> to vector<1x128xf32>
    %9 = vector.broadcast %7 : vector<2x1xf32> to vector<2x128xf32>
    %10 = vector.broadcast %8 : vector<1x128xf32> to vector<2x128xf32>
    %11 = arith.mulf %9, %10 : vector<2x128xf32>
    %12 = arith.addf %6, %11 : vector<2x128xf32>
    %c8 = arith.constant 8 : index
    %c0_3 = arith.constant 0 : index
    %13 = vector.load %arg3[%c8, %c0_3] : memref<112x256xf32, #tpu.memory_space<vmem>>, vector<1x128xf32>
    %14 = vector.broadcast %13 : vector<1x128xf32> to vector<2x128xf32>
    %15 = arith.addf %12, %14 : vector<2x128xf32>
    %c0_4 = arith.constant 0 : index
    %c0_5 = arith.constant 0 : index
    %16 = vector.load %arg1[%c0_4, %c0_5] : memref<1312x128xf32, #tpu.memory_space<vmem>>, vector<128x128xf32>
    %cst = arith.constant dense<0.000000e+00> : vector<2x128xf32>
    %17 = tpu.matmul %15, %16, %cst {dimension_numbers = #tpu.dot_dimension_numbers<[1], [0], [0], [1], [0, 0, 1, 1], [], []>} : vector<2x128xf32>, vector<128x128xf32>, vector<2x128xf32> -> vector<2x128xf32>
    %18 = arith.addf %15, %17 : vector<2x128xf32>
    %c16 = arith.constant 16 : index
    %c0_6 = arith.constant 0 : index
    %19 = vector.load %arg3[%c16, %c0_6] : memref<112x256xf32, #tpu.memory_space<vmem>>, vector<1x128xf32>
    %20 = vector.broadcast %19 : vector<1x128xf32> to vector<2x128xf32>
    %21 = arith.addf %18, %20 : vector<2x128xf32>
    %cst_7 = arith.constant dense<0.000000e+00> : vector<2xf32>
    %22 = vector.multi_reduction <add>, %21, %cst_7 [1] : vector<2x128xf32> to vector<2xf32>
    %23 = vector.shape_cast %22 : vector<2xf32> to vector<2x1xf32>
    %cst_8 = arith.constant 1.280000e+02 : f32
    %24 = vector.broadcast %cst_8 : f32 to vector<2x1xf32>
    %25 = arith.divf %23, %24 : vector<2x1xf32>
    %26 = vector.broadcast %25 : vector<2x1xf32> to vector<2x128xf32>
    %27 = arith.subf %21, %26 : vector<2x128xf32>
    %28 = arith.mulf %27, %27 : vector<2x128xf32>
    %cst_9 = arith.constant dense<0.000000e+00> : vector<2xf32>
    %29 = vector.multi_reduction <add>, %28, %cst_9 [1] : vector<2x128xf32> to vector<2xf32>
    %30 = vector.shape_cast %29 : vector<2xf32> to vector<2x1xf32>
    %cst_10 = arith.constant 1.280000e+02 : f32
    %31 = vector.broadcast %cst_10 : f32 to vector<2x1xf32>
    %32 = arith.divf %30, %31 : vector<2x1xf32>
    %33 = vector.broadcast %25 : vector<2x1xf32> to vector<2x128xf32>
    %34 = arith.subf %21, %33 : vector<2x128xf32>
    %cst_11 = arith.constant 9.99999974E-6 : f32
    %35 = vector.broadcast %cst_11 : f32 to vector<2x1xf32>
    %36 = arith.addf %32, %35 : vector<2x1xf32>
    %37 = math.rsqrt %36 : vector<2x1xf32>
    %38 = vector.broadcast %37 : vector<2x1xf32> to vector<2x128xf32>
    %39 = arith.mulf %34, %38 : vector<2x128xf32>
    %c24 = arith.constant 24 : index
    %c0_12 = arith.constant 0 : index
    %40 = vector.load %arg3[%c24, %c0_12] : memref<112x256xf32, #tpu.memory_space<vmem>>, vector<1x128xf32>
    %41 = vector.broadcast %40 : vector<1x128xf32> to vector<2x128xf32>
    %42 = arith.mulf %39, %41 : vector<2x128xf32>
    %c32 = arith.constant 32 : index
    %c0_13 = arith.constant 0 : index
    %43 = vector.load %arg3[%c32, %c0_13] : memref<112x256xf32, #tpu.memory_space<vmem>>, vector<1x128xf32>
    %44 = vector.broadcast %43 : vector<1x128xf32> to vector<2x128xf32>
    %45 = arith.addf %42, %44 : vector<2x128xf32>
    %c0_14 = arith.constant 0 : index
    %c0_15 = arith.constant 0 : index
    %46 = vector.load %arg2[%c0_14, %c0_15] : memref<256x256xf32, #tpu.memory_space<vmem>>, vector<128x256xf32>
    %cst_16 = arith.constant dense<0.000000e+00> : vector<2x256xf32>
    %47 = tpu.matmul %45, %46, %cst_16 {dimension_numbers = #tpu.dot_dimension_numbers<[1], [0], [0], [1], [0, 0, 1, 1], [], []>} : vector<2x128xf32>, vector<128x256xf32>, vector<2x256xf32> -> vector<2x256xf32>
    %c40 = arith.constant 40 : index
    %c0_17 = arith.constant 0 : index
    %48 = vector.load %arg3[%c40, %c0_17] : memref<112x256xf32, #tpu.memory_space<vmem>>, vector<1x256xf32>
    %49 = vector.broadcast %48 : vector<1x256xf32> to vector<2x256xf32>
    %50 = arith.addf %47, %49 : vector<2x256xf32>
    %cst_18 = arith.constant 0.000000e+00 : f32
    %51 = vector.broadcast %cst_18 : f32 to vector<2x256xf32>
    %52 = arith.maximumf %50, %51 : vector<2x256xf32>
    %c128 = arith.constant 128 : index
    %c0_19 = arith.constant 0 : index
    %53 = vector.load %arg1[%c128, %c0_19] : memref<1312x128xf32, #tpu.memory_space<vmem>>, vector<256x128xf32>
    %cst_20 = arith.constant dense<0.000000e+00> : vector<2x128xf32>
    %54 = tpu.matmul %52, %53, %cst_20 {dimension_numbers = #tpu.dot_dimension_numbers<[1], [0], [0], [1], [0, 0, 1, 1], [], []>} : vector<2x256xf32>, vector<256x128xf32>, vector<2x128xf32> -> vector<2x128xf32>
    %55 = arith.addf %45, %54 : vector<2x128xf32>
    %c48 = arith.constant 48 : index
    %c0_21 = arith.constant 0 : index
    %56 = vector.load %arg3[%c48, %c0_21] : memref<112x256xf32, #tpu.memory_space<vmem>>, vector<1x128xf32>
    %57 = vector.broadcast %56 : vector<1x128xf32> to vector<2x128xf32>
    %58 = arith.addf %55, %57 : vector<2x128xf32>
    %cst_22 = arith.constant dense<0.000000e+00> : vector<2xf32>
    %59 = vector.multi_reduction <add>, %58, %cst_22 [1] : vector<2x128xf32> to vector<2xf32>
    %60 = vector.shape_cast %59 : vector<2xf32> to vector<2x1xf32>
    %cst_23 = arith.constant 1.280000e+02 : f32
    %61 = vector.broadcast %cst_23 : f32 to vector<2x1xf32>
    %62 = arith.divf %60, %61 : vector<2x1xf32>
    %63 = vector.broadcast %62 : vector<2x1xf32> to vector<2x128xf32>
    %64 = arith.subf %58, %63 : vector<2x128xf32>
    %65 = arith.mulf %64, %64 : vector<2x128xf32>
    %cst_24 = arith.constant dense<0.000000e+00> : vector<2xf32>
    %66 = vector.multi_reduction <add>, %65, %cst_24 [1] : vector<2x128xf32> to vector<2xf32>
    %67 = vector.shape_cast %66 : vector<2xf32> to vector<2x1xf32>
    %cst_25 = arith.constant 1.280000e+02 : f32
    %68 = vector.broadcast %cst_25 : f32 to vector<2x1xf32>
    %69 = arith.divf %67, %68 : vector<2x1xf32>
    %70 = vector.broadcast %62 : vector<2x1xf32> to vector<2x128xf32>
    %71 = arith.subf %58, %70 : vector<2x128xf32>
    %cst_26 = arith.constant 9.99999974E-6 : f32
    %72 = vector.broadcast %cst_26 : f32 to vector<2x1xf32>
    %73 = arith.addf %69, %72 : vector<2x1xf32>
    %74 = math.rsqrt %73 : vector<2x1xf32>
    %75 = vector.broadcast %74 : vector<2x1xf32> to vector<2x128xf32>
    %76 = arith.mulf %71, %75 : vector<2x128xf32>
    %c384 = arith.constant 384 : index
    %c0_27 = arith.constant 0 : index
    %77 = vector.load %arg1[%c384, %c0_27] : memref<1312x128xf32, #tpu.memory_space<vmem>>, vector<128x128xf32>
    %cst_28 = arith.constant dense<0.000000e+00> : vector<2x128xf32>
    %78 = tpu.matmul %76, %77, %cst_28 {dimension_numbers = #tpu.dot_dimension_numbers<[1], [0], [0], [1], [0, 0, 1, 1], [], []>} : vector<2x128xf32>, vector<128x128xf32>, vector<2x128xf32> -> vector<2x128xf32>
    %c56 = arith.constant 56 : index
    %c0_29 = arith.constant 0 : index
    %79 = vector.load %arg3[%c56, %c0_29] : memref<112x256xf32, #tpu.memory_space<vmem>>, vector<1x128xf32>
    %80 = vector.broadcast %79 : vector<1x128xf32> to vector<2x128xf32>
    %81 = arith.addf %78, %80 : vector<2x128xf32>
    %cst_30 = arith.constant 0.000000e+00 : f32
    %82 = vector.broadcast %cst_30 : f32 to vector<2x128xf32>
    %83 = arith.maximumf %81, %82 : vector<2x128xf32>
    %c128_31 = arith.constant 128 : index
    %c0_32 = arith.constant 0 : index
    %84 = vector.load %arg2[%c128_31, %c0_32] : memref<256x256xf32, #tpu.memory_space<vmem>>, vector<128x256xf32>
    %cst_33 = arith.constant dense<0.000000e+00> : vector<2x256xf32>
    %85 = tpu.matmul %83, %84, %cst_33 {dimension_numbers = #tpu.dot_dimension_numbers<[1], [0], [0], [1], [0, 0, 1, 1], [], []>} : vector<2x128xf32>, vector<128x256xf32>, vector<2x256xf32> -> vector<2x256xf32>
    %c64 = arith.constant 64 : index
    %c0_34 = arith.constant 0 : index
    %86 = vector.load %arg3[%c64, %c0_34] : memref<112x256xf32, #tpu.memory_space<vmem>>, vector<1x256xf32>
    %87 = vector.broadcast %86 : vector<1x256xf32> to vector<2x256xf32>
    %88 = arith.addf %85, %87 : vector<2x256xf32>
    %cst_35 = arith.constant 0.000000e+00 : f32
    %89 = vector.broadcast %cst_35 : f32 to vector<2x256xf32>
    %90 = arith.maximumf %88, %89 : vector<2x256xf32>
    %c512 = arith.constant 512 : index
    %c0_36 = arith.constant 0 : index
    %91 = vector.load %arg1[%c512, %c0_36] : memref<1312x128xf32, #tpu.memory_space<vmem>>, vector<256x128xf32>
    %cst_37 = arith.constant dense<0.000000e+00> : vector<2x128xf32>
    %92 = tpu.matmul %90, %91, %cst_37 {dimension_numbers = #tpu.dot_dimension_numbers<[1], [0], [0], [1], [0, 0, 1, 1], [], []>} : vector<2x256xf32>, vector<256x128xf32>, vector<2x128xf32> -> vector<2x128xf32>
    %c72 = arith.constant 72 : index
    %c0_38 = arith.constant 0 : index
    %93 = vector.load %arg3[%c72, %c0_38] : memref<112x256xf32, #tpu.memory_space<vmem>>, vector<1x128xf32>
    %94 = vector.broadcast %93 : vector<1x128xf32> to vector<2x128xf32>
    %95 = arith.addf %92, %94 : vector<2x128xf32>
    %cst_39 = arith.constant 0.000000e+00 : f32
    %96 = vector.broadcast %cst_39 : f32 to vector<2x128xf32>
    %97 = arith.maximumf %95, %96 : vector<2x128xf32>
    %c768 = arith.constant 768 : index
    %c0_40 = arith.constant 0 : index
    %98 = vector.load %arg1[%c768, %c0_40] : memref<1312x128xf32, #tpu.memory_space<vmem>>, vector<32x128xf32>
    %cst_41 = arith.constant dense<0.000000e+00> : vector<2x128xf32>
    %99 = tpu.matmul %0, %98, %cst_41 {dimension_numbers = #tpu.dot_dimension_numbers<[1], [0], [0], [1], [0, 0, 1, 1], [], []>} : vector<2x32xf32>, vector<32x128xf32>, vector<2x128xf32> -> vector<2x128xf32>
    %c800 = arith.constant 800 : index
    %c0_42 = arith.constant 0 : index
    %100 = vector.load %arg1[%c800, %c0_42] : memref<1312x128xf32, #tpu.memory_space<vmem>>, vector<128x128xf32>
    %cst_43 = arith.constant dense<0.000000e+00> : vector<2x128xf32>
    %101 = tpu.matmul %97, %100, %cst_43 {dimension_numbers = #tpu.dot_dimension_numbers<[1], [0], [0], [1], [0, 0, 1, 1], [], []>} : vector<2x128xf32>, vector<128x128xf32>, vector<2x128xf32> -> vector<2x128xf32>
    %102 = arith.addf %99, %101 : vector<2x128xf32>
    %c80 = arith.constant 80 : index
    %c0_44 = arith.constant 0 : index
    %103 = vector.load %arg3[%c80, %c0_44] : memref<112x256xf32, #tpu.memory_space<vmem>>, vector<1x128xf32>
    %104 = vector.broadcast %103 : vector<1x128xf32> to vector<2x128xf32>
    %105 = arith.addf %102, %104 : vector<2x128xf32>
    %cst_45 = arith.constant 0.000000e+00 : f32
    %106 = vector.broadcast %cst_45 : f32 to vector<2x128xf32>
    %107 = arith.maximumf %105, %106 : vector<2x128xf32>
    %c928 = arith.constant 928 : index
    %c0_46 = arith.constant 0 : index
    %108 = vector.load %arg1[%c928, %c0_46] : memref<1312x128xf32, #tpu.memory_space<vmem>>, vector<128x128xf32>
    %cst_47 = arith.constant dense<0.000000e+00> : vector<2x128xf32>
    %109 = tpu.matmul %107, %108, %cst_47 {dimension_numbers = #tpu.dot_dimension_numbers<[1], [0], [0], [1], [0, 0, 1, 1], [], []>} : vector<2x128xf32>, vector<128x128xf32>, vector<2x128xf32> -> vector<2x128xf32>
    %c88 = arith.constant 88 : index
    %c0_48 = arith.constant 0 : index
    %110 = vector.load %arg3[%c88, %c0_48] : memref<112x256xf32, #tpu.memory_space<vmem>>, vector<1x128xf32>
    %111 = vector.broadcast %110 : vector<1x128xf32> to vector<2x128xf32>
    %112 = arith.addf %109, %111 : vector<2x128xf32>
    %cst_49 = arith.constant 0.000000e+00 : f32
    %113 = vector.broadcast %cst_49 : f32 to vector<2x128xf32>
    %114 = arith.maximumf %112, %113 : vector<2x128xf32>
    %c1056 = arith.constant 1056 : index
    %c0_50 = arith.constant 0 : index
    %115 = vector.load %arg1[%c1056, %c0_50] : memref<1312x128xf32, #tpu.memory_space<vmem>>, vector<128x128xf32>
    %cst_51 = arith.constant dense<0.000000e+00> : vector<2x128xf32>
    %116 = tpu.matmul %114, %115, %cst_51 {dimension_numbers = #tpu.dot_dimension_numbers<[1], [0], [0], [1], [0, 0, 1, 1], [], []>} : vector<2x128xf32>, vector<128x128xf32>, vector<2x128xf32> -> vector<2x128xf32>
    %c96 = arith.constant 96 : index
    %c0_52 = arith.constant 0 : index
    %117 = vector.load %arg3[%c96, %c0_52] : memref<112x256xf32, #tpu.memory_space<vmem>>, vector<1x128xf32>
    %118 = vector.broadcast %117 : vector<1x128xf32> to vector<2x128xf32>
    %119 = arith.addf %116, %118 : vector<2x128xf32>
    %cst_53 = arith.constant 0.000000e+00 : f32
    %120 = vector.broadcast %cst_53 : f32 to vector<2x128xf32>
    %121 = arith.maximumf %119, %120 : vector<2x128xf32>
    %c1184 = arith.constant 1184 : index
    %c0_54 = arith.constant 0 : index
    %122 = vector.load %arg1[%c1184, %c0_54] : memref<1312x128xf32, #tpu.memory_space<vmem>>, vector<128x128xf32>
    %cst_55 = arith.constant dense<0.000000e+00> : vector<2x128xf32>
    %123 = tpu.matmul %121, %122, %cst_55 {dimension_numbers = #tpu.dot_dimension_numbers<[1], [0], [0], [1], [0, 0, 1, 1], [], []>} : vector<2x128xf32>, vector<128x128xf32>, vector<2x128xf32> -> vector<2x128xf32>
    %c104 = arith.constant 104 : index
    %c0_56 = arith.constant 0 : index
    %124 = vector.load %arg3[%c104, %c0_56] : memref<112x256xf32, #tpu.memory_space<vmem>>, vector<1x128xf32>
    %125 = vector.broadcast %124 : vector<1x128xf32> to vector<2x128xf32>
    %126 = arith.addf %123, %125 : vector<2x128xf32>
    %c0_57 = arith.constant 0 : index
    %c0_58 = arith.constant 0 : index
    %127 = vector.load %arg4[%c0_57, %c0_58] : memref<2x128xf32, #tpu.memory_space<vmem>>, vector<2x128xf32>
    tpu.vector_store %arg4[%c0_57, %c0_58], %126 {strides = array<i32>} : memref<2x128xf32, #tpu.memory_space<vmem>>, vector<2x128xf32>,
    return
  }
}

</mosaic_0001>

<llo_original>
// kernel: tpu_custom_call.1
$region0: #{tpu_custom_call.1}
  #allocation0 [shape = 'u32[]', space=smem, size = 0x4, offset = 0x4, fixed_abs, tag = 'smem constant byte address 0x4 - core index']
  #allocation1 [shape = 'u32[144,128]{1,0:T(1,128)}', space=vmem, size = 0x12000, scoped, tag = 'internal scratch']
  %s0 = inlined_call_operand.hbm [shape: f32[2,32], index: 0, kind: input, shape index: {}]
  %s1 = inlined_call_operand.hbm [shape: f32[1312,128], index: 1, kind: input, shape index: {}]
  %s2 = inlined_call_operand.hbm [shape: f32[256,256], index: 2, kind: input, shape index: {}]
  %s3 = inlined_call_operand.hbm [shape: f32[112,256], index: 3, kind: input, shape index: {}]
  %s4 = inlined_call_operand.hbm [shape: f32[2,128], index: 4, kind: output, shape index: {}]
  %s5 = sld [smem:[#allocation0]]
  $region42: #{tpu_custom_call.1} parent=0
    _
  %s7 = ssub.s32 1, %s5
  %s8 = scalar_select 0, %s7, %s5
  $region1: #{tpu_custom_call.1} parent=0
    #allocation2 [shape = 'u8[1024]{0}', space=vmem, size = 0x400, scoped, tag = 'input window, operand 0, single buffered']
    #allocation3 [shape = 's32[1]{0}', space=sflag, size = 0x4, scoped, tag = 'scoped memory for tpu_custom_call.1']
    #allocation4 [shape = 's32[1]{0}', space=sflag, size = 0x4, scoped, tag = 'scoped memory for tpu_custom_call.1']
    #allocation5 [shape = 'u8[671744]{0}', space=vmem, size = 0xa4000, scoped, tag = 'input window, operand 1, single buffered']
    #allocation6 [shape = 's32[1]{0}', space=sflag, size = 0x4, scoped, tag = 'scoped memory for tpu_custom_call.1']
    #allocation7 [shape = 'u8[262144]{0}', space=vmem, size = 0x40000, scoped, tag = 'input window, operand 2, single buffered']
    #allocation8 [shape = 'u8[114688]{0}', space=vmem, size = 0x1c000, scoped, tag = 'input window, operand 3, single buffered']
    #allocation9 [shape = 's32[1]{0}', space=sflag, size = 0x4, scoped, tag = 'scoped memory for tpu_custom_call.1']
    #allocation10 [shape = 'u8[1024]{0}', space=vmem, size = 0x400, scoped, tag = 'output window, operand 0, single buffered']
    %9 = vsyncpa [#allocation3], 0
    %10 = vsyncpa [#allocation6], 0
    %11 = vsyncpa [#allocation9], 0
    %12 = vsyncpa [#allocation4], 0
    // Predicated region
    $region2: #{tpu_custom_call.1} parent=1 // pred_check
      _
    $region3: #{tpu_custom_call.1} parent=1 // pred_check_branch
      %14 = sbr.rel (0) target = $region5
    $region4: #{tpu_custom_call.1} parent=1 // pred_region
      %s16 = ssub.s32 32, 32
      %17 = vsyncadd [#allocation3], %s16
      %s19 = sshll.u32 [#allocation2], 4
      %s20 = int_to_ptr.vmem [resolvable:$true] %s19
      %22 = dma.hbm_to_vmem [thread:$0]  %s0, 32, %s20, [#allocation3]
    $region5: #{tpu_custom_call.1} parent=1 // pred_fallthru
      _
    // Predicated region
    $region6: #{tpu_custom_call.1} parent=1 // pred_check
      _
    $region7: #{tpu_custom_call.1} parent=1 // pred_check_branch
      %24 = sbr.rel (0) target = $region9
    $region8: #{tpu_custom_call.1} parent=1 // pred_region
      %s26 = ssub.s32 20992, 20992
      %27 = vsyncadd [#allocation6], %s26
      %s28 = sshll.u32 [#allocation5], 4
      %s29 = int_to_ptr.vmem [resolvable:$true] %s28
      %34 = dma.hbm_to_vmem [thread:$0]  %s1, 20992, %s29, [#allocation6], 128, 128, 8
    $region9: #{tpu_custom_call.1} parent=1 // pred_fallthru
      _
    // Predicated region
    $region10: #{tpu_custom_call.1} parent=1 // pred_check
      _
    $region11: #{tpu_custom_call.1} parent=1 // pred_check_branch
      %36 = sbr.rel (0) target = $region13
    $region12: #{tpu_custom_call.1} parent=1 // pred_region
      %s38 = ssub.s32 8192, 8192
      %39 = vsyncadd [#allocation6], %s38
      %s40 = sshll.u32 [#allocation7], 4
      %s41 = int_to_ptr.vmem [resolvable:$true] %s40
      %46 = dma.hbm_to_vmem [thread:$0]  %s2, 8192, %s41, [#allocation6], 256, 256, 16
    $region13: #{tpu_custom_call.1} parent=1 // pred_fallthru
      _
    // Predicated region
    $region14: #{tpu_custom_call.1} parent=1 // pred_check
      _
    $region15: #{tpu_custom_call.1} parent=1 // pred_check_branch
      %48 = sbr.rel (0) target = $region17
    $region16: #{tpu_custom_call.1} parent=1 // pred_region
      %s50 = ssub.s32 3584, 3584
      %51 = vsyncadd [#allocation9], %s50
      %s52 = sshll.u32 [#allocation8], 4
      %s53 = int_to_ptr.vmem [resolvable:$true] %s52
      %58 = dma.hbm_to_vmem [thread:$0]  %s3, 3584, %s53, [#allocation9], 256, 256, 16
    $region17: #{tpu_custom_call.1} parent=1 // pred_fallthru
      _
    // Predicated region
    $region18: #{tpu_custom_call.1} parent=1 // pred_check
      _
    $region19: #{tpu_custom_call.1} parent=1 // pred_check_branch
      %60 = sbr.rel (0) target = $region21
    $region20: #{tpu_custom_call.1} parent=1 // pred_region
      %61 = dma.done [#allocation3], 32
    $region21: #{tpu_custom_call.1} parent=1 // pred_fallthru
      _
    // Predicated region
    $region22: #{tpu_custom_call.1} parent=1 // pred_check
      _
    $region23: #{tpu_custom_call.1} parent=1 // pred_check_branch
      %63 = sbr.rel (0) target = $region25
    $region24: #{tpu_custom_call.1} parent=1 // pred_region
      %64 = dma.done [#allocation6], 20992
    $region25: #{tpu_custom_call.1} parent=1 // pred_fallthru
      _
    // Predicated region
    $region26: #{tpu_custom_call.1} parent=1 // pred_check
      _
    $region27: #{tpu_custom_call.1} parent=1 // pred_check_branch
      %66 = sbr.rel (0) target = $region29
    $region28: #{tpu_custom_call.1} parent=1 // pred_region
      %67 = dma.done [#allocation6], 8192
    $region29: #{tpu_custom_call.1} parent=1 // pred_fallthru
      _
    // Predicated region
    $region30: #{tpu_custom_call.1} parent=1 // pred_check
      _
    $region31: #{tpu_custom_call.1} parent=1 // pred_check_branch
      %69 = sbr.rel (0) target = $region33
    $region32: #{tpu_custom_call.1} parent=1 // pred_region
      %70 = dma.done [#allocation9], 3584
    $region33: #{tpu_custom_call.1} parent=1 // pred_fallthru
      _
    %v71 = vld [vmem:[#allocation2] sm:$0x3]
    %v72 = vld [vmem:[#allocation8] sm:$0x3]
    %74 = vset.pattern.permute.xlu0 30
    %75 = vperm.xlu0 %74, %v71
    %v76 = vpop.permute.xlu0 %75
    %v78 = vlaneseq
    %v79 = vshrl.u32 %v78, 7
    %v80 = vsub.s32 0, %v79
    %v81 = vrot.slane %v72, %v80
    %v82 = vmul.f32 %v76, %v81
    %83 = vset.pattern.permute.xlu0 31
    %84 = vperm.xlu0 %83, %v71
    %v85 = vpop.permute.xlu0 %84
    %v87 = vlaneseq
    %v88 = vshrl.u32 %v87, 7
    %v89 = vsub.s32 1, %v88
    %v90 = vrot.slane %v72, %v89
    %v91 = vmul.f32 %v85, %v90
    %v92 = vadd.f32 %v82, %v91
    %v93 = vld [vmem:[#allocation8 + $0x10] ss:$0 sm:$0xff]
    %v94 = vadd.f32 %v92, %v93
    %v95 = vld [vmem:[#allocation5] sm:$0xff]
    %v96 = vld [vmem:[#allocation5 + $0x8] sm:$0xff]
    %v97 = vld [vmem:[#allocation5 + $0x10] sm:$0xff]
    %v98 = vld [vmem:[#allocation5 + $0x18] sm:$0xff]
    %v99 = vld [vmem:[#allocation5 + $0x20] sm:$0xff]
    %v100 = vld [vmem:[#allocation5 + $0x28] sm:$0xff]
    %v101 = vld [vmem:[#allocation5 + $0x30] sm:$0xff]
    %v102 = vld [vmem:[#allocation5 + $0x38] sm:$0xff]
    %v103 = vld [vmem:[#allocation5 + $0x40] sm:$0xff]
    %v104 = vld [vmem:[#allocation5 + $0x48] sm:$0xff]
    %v105 = vld [vmem:[#allocation5 + $0x50] sm:$0xff]
    %v106 = vld [vmem:[#allocation5 + $0x58] sm:$0xff]
    %v107 = vld [vmem:[#allocation5 + $0x60] sm:$0xff]
    %v108 = vld [vmem:[#allocation5 + $0x68] sm:$0xff]
    %v109 = vld [vmem:[#allocation5 + $0x70] sm:$0xff]
    %v110 = vld [vmem:[#allocation5 + $0x78] sm:$0xff]
    %111 = vmatprep.subr.mxu0 0.0
    %112 = vmatpush1.msra.mxu0 %v95
    %113 = vmatprep.subr.mxu0 0.0
    %114 = vmatpush1.msra.mxu0 %v96
    %115 = vmatprep.subr.mxu0 0.0
    %116 = vmatpush1.msra.mxu0 %v97
    %117 = vmatprep.subr.mxu0 0.0
    %118 = vmatpush1.msra.mxu0 %v98
    %119 = vmatprep.subr.mxu0 0.0
    %120 = vmatpush1.msra.mxu0 %v99
    %121 = vmatprep.subr.mxu0 0.0
    %122 = vmatpush1.msra.mxu0 %v100
    %123 = vmatprep.subr.mxu0 0.0
    %124 = vmatpush1.msra.mxu0 %v101
    %125 = vmatprep.subr.mxu0 0.0
    %126 = vmatpush1.msra.mxu0 %v102
    %127 = vmatprep.subr.mxu0 0.0
    %128 = vmatpush1.msra.mxu0 %v103
    %129 = vmatprep.subr.mxu0 0.0
    %130 = vmatpush1.msra.mxu0 %v104
    %131 = vmatprep.subr.mxu0 0.0
    %132 = vmatpush1.msra.mxu0 %v105
    %133 = vmatprep.subr.mxu0 0.0
    %134 = vmatpush1.msra.mxu0 %v106
    %135 = vmatprep.subr.mxu0 0.0
    %136 = vmatpush1.msra.mxu0 %v107
    %137 = vmatprep.subr.mxu0 0.0
    %138 = vmatpush1.msra.mxu0 %v108
    %139 = vmatprep.subr.mxu0 0.0
    %140 = vmatpush1.msra.mxu0 %v109
    %141 = vmatprep.subr.mxu0 0.0
    %142 = vmatpush1.msra.mxu0 %v110
    %143 = vmatprep.subr.mxu0 0.0
    %144 = vmatpush1.msra.mxu0 0.0
    %145 = vmatprep.subr.mxu0 0.0
    %146 = vmatpush1.msra.mxu0 0.0
    %147 = vmatprep.subr.mxu0 0.0
    %148 = vmatpush1.msra.mxu0 0.0
    %149 = vmatprep.subr.mxu0 0.0
    %150 = vmatpush1.msra.mxu0 0.0
    %151 = vmatprep.subr.mxu0 0.0
    %152 = vmatpush1.msra.mxu0 0.0
    %153 = vmatprep.subr.mxu0 0.0
    %154 = vmatpush1.msra.mxu0 0.0
    %155 = vmatprep.subr.mxu0 0.0
    %156 = vmatpush1.msra.mxu0 0.0
    %157 = vmatprep.subr.mxu0 0.0
    %158 = vmatpush1.msra.mxu0 0.0
    %159 = vmatprep.subr.mxu0 0.0
    %160 = vmatpush1.msra.mxu0 0.0
    %161 = vmatprep.subr.mxu0 0.0
    %162 = vmatpush1.msra.mxu0 0.0
    %163 = vmatprep.subr.mxu0 0.0
    %164 = vmatpush1.msra.mxu0 0.0
    %165 = vmatprep.subr.mxu0 0.0
    %166 = vmatpush1.msra.mxu0 0.0
    %167 = vmatprep.subr.mxu0 0.0
    %168 = vmatpush1.msra.mxu0 0.0
    %169 = vmatprep.subr.mxu0 0.0
    %170 = vmatpush1.msra.mxu0 0.0
    %171 = vmatprep.subr.mxu0 0.0
    %172 = vmatpush1.msra.mxu0 0.0
    %173 = vmatprep.subr.mxu0 0.0
    %174 = vmatpush1.msra.mxu0 0.0
    %175 = vmatprep.mubr.f32.mxu0 0.0
    %176 = vmatmul.mubr.f32.gmra.mrb[0].mxu0 %v94
    %v177 = vpop.f32.mrb[0].mxu0
    %v178 = vadd.f32 0.0, %v177
    %v179 = vpop.f32.mrb[0].mxu0
    %180 = vdwg.mxu0
    %v181 = vadd.f32 %v94, %v178
    %v182 = vld [vmem:[#allocation8 + $0x20] ss:$0 sm:$0xff]
    %v183 = vadd.f32 %v181, %v182
    %vm184 = vcmask 1041408
    %v185 = vsel %vm184, %v183, 0.0
    %186 = vadd.xlane.f32.xlu0 %v185
    %v187 = vpop.xlane.xlu0 %186
    %v188 = vrcp.pop 128.0
    %v189 = vmul.f32 %v187, %v188
    %v190 = vsub.f32 %v183, %v189
    %v191 = vmul.f32 %v190, %v190
    %v192 = vsel %vm184, %v191, 0.0
    %193 = vadd.xlane.f32.xlu0 %v192
    %v194 = vpop.xlane.xlu0 %193
    %v195 = vmul.f32 %v194, %v188
    %v196 = vadd.f32 %v195, 1e-05
    %v197 = vrsqrt.pop %v196
    %v198 = vmul.f32 %v190, %v197
    %v199 = vld [vmem:[#allocation8 + $0x30] ss:$0 sm:$0xff]
    %v200 = vmul.f32 %v198, %v199
    %v201 = vld [vmem:[#allocation8 + $0x40] ss:$0 sm:$0xff]
    %v202 = vadd.f32 %v200, %v201
    %v203 = vld [vmem:[#allocation7] sm:$0xff]
    %v204 = vld [vmem:[#allocation7 + $0x8] sm:$0xff]
    %v205 = vld [vmem:[#allocation7 + $0x10] sm:$0xff]
    %v206 = vld [vmem:[#allocation7 + $0x18] sm:$0xff]
    %v207 = vld [vmem:[#allocation7 + $0x20] sm:$0xff]
    %v208 = vld [vmem:[#allocation7 + $0x28] sm:$0xff]
    %v209 = vld [vmem:[#allocation7 + $0x30] sm:$0xff]
    %v210 = vld [vmem:[#allocation7 + $0x38] sm:$0xff]
    %v211 = vld [vmem:[#allocation7 + $0x40] sm:$0xff]
    %v212 = vld [vmem:[#allocation7 + $0x48] sm:$0xff]
    %v213 = vld [vmem:[#allocation7 + $0x50] sm:$0xff]
    %v214 = vld [vmem:[#allocation7 + $0x58] sm:$0xff]
    %v215 = vld [vmem:[#allocation7 + $0x60] sm:$0xff]
    %v216 = vld [vmem:[#allocation7 + $0x68] sm:$0xff]
    %v217 = vld [vmem:[#allocation7 + $0x70] sm:$0xff]
    %v218 = vld [vmem:[#allocation7 + $0x78] sm:$0xff]
    %v219 = vld [vmem:[#allocation7 + $0x80] sm:$0xff]
    %v220 = vld [vmem:[#allocation7 + $0x88] sm:$0xff]
    %v221 = vld [vmem:[#allocation7 + $0x90] sm:$0xff]
    %v222 = vld [vmem:[#allocation7 + $0x98] sm:$0xff]
    %v223 = vld [vmem:[#allocation7 + $0xa0] sm:$0xff]
    %v224 = vld [vmem:[#allocation7 + $0xa8] sm:$0xff]
    %v225 = vld [vmem:[#allocation7 + $0xb0] sm:$0xff]
    %v226 = vld [vmem:[#allocation7 + $0xb8] sm:$0xff]
    %v227 = vld [vmem:[#allocation7 + $0xc0] sm:$0xff]
    %v228 = vld [vmem:[#allocation7 + $0xc8] sm:$0xff]
    %v229 = vld [vmem:[#allocation7 + $0xd0] sm:$0xff]
    %v230 = vld [vmem:[#allocation7 + $0xd8] sm:$0xff]
    %v231 = vld [vmem:[#allocation7 + $0xe0] sm:$0xff]
    %v232 = vld [vmem:[#allocation7 + $0xe8] sm:$0xff]
    %v233 = vld [vmem:[#allocation7 + $0xf0] sm:$0xff]
    %v234 = vld [vmem:[#allocation7 + $0xf8] sm:$0xff]
    %s235 = scalar_lea.vmem [#allocation8], 80
    %v236 = vld [vmem:[%s235] ss:$8 sm:$0x3]
    %v238 = vlaneseq
    %v239 = vshrl.u32 %v238, 7
    %v240 = vsub.s32 0, %v239
    %v241 = vrot.slane %v236, %v240
    %v242 = vlaneseq
    %v243 = vshrl.u32 %v242, 7
    %v244 = vsub.s32 1, %v243
    %v245 = vrot.slane %v236, %v244
    %248 = vmatprep.subr.mxu0 %v204
    %249 = vmatpush1.msra.mxu0 %v203
    %250 = vmatprep.subr.mxu0 %v206
    %251 = vmatpush1.msra.mxu0 %v205
    %252 = vmatprep.subr.mxu0 %v208
    %253 = vmatpush1.msra.mxu0 %v207
    %254 = vmatprep.subr.mxu0 %v210
    %255 = vmatpush1.msra.mxu0 %v209
    %256 = vmatprep.subr.mxu0 %v212
    %257 = vmatpush1.msra.mxu0 %v211
    %258 = vmatprep.subr.mxu0 %v214
    %259 = vmatpush1.msra.mxu0 %v213
    %260 = vmatprep.subr.mxu0 %v216
    %261 = vmatpush1.msra.mxu0 %v215
    %262 = vmatprep.subr.mxu0 %v218
    %263 = vmatpush1.msra.mxu0 %v217
    %264 = vmatprep.subr.mxu0 %v220
    %265 = vmatpush1.msra.mxu0 %v219
    %266 = vmatprep.subr.mxu0 %v222
    %267 = vmatpush1.msra.mxu0 %v221
    %268 = vmatprep.subr.mxu0 %v224
    %269 = vmatpush1.msra.mxu0 %v223
    %270 = vmatprep.subr.mxu0 %v226
    %271 = vmatpush1.msra.mxu0 %v225
    %272 = vmatprep.subr.mxu0 %v228
    %273 = vmatpush1.msra.mxu0 %v227
    %274 = vmatprep.subr.mxu0 %v230
    %275 = vmatpush1.msra.mxu0 %v229
    %276 = vmatprep.subr.mxu0 %v232
    %277 = vmatpush1.msra.mxu0 %v231
    %278 = vmatprep.subr.mxu0 %v234
    %279 = vmatpush1.msra.mxu0 %v233
    %280 = vmatprep.subr.mxu0 0.0
    %281 = vmatpush1.msra.mxu0 0.0
    %282 = vmatprep.subr.mxu0 0.0
    %283 = vmatpush1.msra.mxu0 0.0
    %284 = vmatprep.subr.mxu0 0.0
    %285 = vmatpush1.msra.mxu0 0.0
    %286 = vmatprep.subr.mxu0 0.0
    %287 = vmatpush1.msra.mxu0 0.0
    %288 = vmatprep.subr.mxu0 0.0
    %289 = vmatpush1.msra.mxu0 0.0
    %290 = vmatprep.subr.mxu0 0.0
    %291 = vmatpush1.msra.mxu0 0.0
    %292 = vmatprep.subr.mxu0 0.0
    %293 = vmatpush1.msra.mxu0 0.0
    %294 = vmatprep.subr.mxu0 0.0
    %295 = vmatpush1.msra.mxu0 0.0
    %296 = vmatprep.subr.mxu0 0.0
    %297 = vmatpush1.msra.mxu0 0.0
    %298 = vmatprep.subr.mxu0 0.0
    %299 = vmatpush1.msra.mxu0 0.0
    %300 = vmatprep.subr.mxu0 0.0
    %301 = vmatpush1.msra.mxu0 0.0
    %302 = vmatprep.subr.mxu0 0.0
    %303 = vmatpush1.msra.mxu0 0.0
    %304 = vmatprep.subr.mxu0 0.0
    %305 = vmatpush1.msra.mxu0 0.0
    %306 = vmatprep.subr.mxu0 0.0
    %307 = vmatpush1.msra.mxu0 0.0
    %308 = vmatprep.subr.mxu0 0.0
    %309 = vmatpush1.msra.mxu0 0.0
    %310 = vmatprep.subr.mxu0 0.0
    %311 = vmatpush1.msra.mxu0 0.0
    %312 = vmatprep.mubr.f32.mxu0 0.0
    %313 = vmatmul.mubr.f32.gmra.mrb[0].mxu0 %v202
    %v314 = vpop.f32.mrb[0].mxu0
    %v315 = vadd.f32 %v241, %v314
    %v316 = vpop.f32.mrb[0].mxu0
    %v317 = vadd.f32 %v245, %v316
    %318 = vdwg.mxu0
    %v319 = vmax.f32 %v315, 0.0
    %v320 = vmax.f32 %v317, 0.0
    %v321 = vld [vmem:[#allocation5 + $0x80] sm:$0xff]
    %v322 = vld [vmem:[#allocation5 + $0x88] sm:$0xff]
    %v323 = vld [vmem:[#allocation5 + $0x90] sm:$0xff]
    %v324 = vld [vmem:[#allocation5 + $0x98] sm:$0xff]
    %v325 = vld [vmem:[#allocation5 + $0xa0] sm:$0xff]
    %v326 = vld [vmem:[#allocation5 + $0xa8] sm:$0xff]
    %v327 = vld [vmem:[#allocation5 + $0xb0] sm:$0xff]
    %v328 = vld [vmem:[#allocation5 + $0xb8] sm:$0xff]
    %v329 = vld [vmem:[#allocation5 + $0xc0] sm:$0xff]
    %v330 = vld [vmem:[#allocation5 + $0xc8] sm:$0xff]
    %v331 = vld [vmem:[#allocation5 + $0xd0] sm:$0xff]
    %v332 = vld [vmem:[#allocation5 + $0xd8] sm:$0xff]
    %v333 = vld [vmem:[#allocation5 + $0xe0] sm:$0xff]
    %v334 = vld [vmem:[#allocation5 + $0xe8] sm:$0xff]
    %v335 = vld [vmem:[#allocation5 + $0xf0] sm:$0xff]
    %v336 = vld [vmem:[#allocation5 + $0xf8] sm:$0xff]
    %v337 = vld [vmem:[#allocation5 + $0x100] sm:$0xff]
    %v338 = vld [vmem:[#allocation5 + $0x108] sm:$0xff]
    %v339 = vld [vmem:[#allocation5 + $0x110] sm:$0xff]
    %v340 = vld [vmem:[#allocation5 + $0x118] sm:$0xff]
    %v341 = vld [vmem:[#allocation5 + $0x120] sm:$0xff]
    %v342 = vld [vmem:[#allocation5 + $0x128] sm:$0xff]
    %v343 = vld [vmem:[#allocation5 + $0x130] sm:$0xff]
    %v344 = vld [vmem:[#allocation5 + $0x138] sm:$0xff]
    %v345 = vld [vmem:[#allocation5 + $0x140] sm:$0xff]
    %v346 = vld [vmem:[#allocation5 + $0x148] sm:$0xff]
    %v347 = vld [vmem:[#allocation5 + $0x150] sm:$0xff]
    %v348 = vld [vmem:[#allocation5 + $0x158] sm:$0xff]
    %v349 = vld [vmem:[#allocation5 + $0x160] sm:$0xff]
    %v350 = vld [vmem:[#allocation5 + $0x168] sm:$0xff]
    %v351 = vld [vmem:[#allocation5 + $0x170] sm:$0xff]
    %v352 = vld [vmem:[#allocation5 + $0x178] sm:$0xff]
    %353 = vmatprep.subr.mxu0 0.0
    %354 = vmatpush1.msra.mxu0 %v321
    %355 = vmatprep.subr.mxu0 0.0
    %356 = vmatpush1.msra.mxu0 %v322
    %357 = vmatprep.subr.mxu0 0.0
    %358 = vmatpush1.msra.mxu0 %v323
    %359 = vmatprep.subr.mxu0 0.0
    %360 = vmatpush1.msra.mxu0 %v324
    %361 = vmatprep.subr.mxu0 0.0
    %362 = vmatpush1.msra.mxu0 %v325
    %363 = vmatprep.subr.mxu0 0.0
    %364 = vmatpush1.msra.mxu0 %v326
    %365 = vmatprep.subr.mxu0 0.0
    %366 = vmatpush1.msra.mxu0 %v327
    %367 = vmatprep.subr.mxu0 0.0
    %368 = vmatpush1.msra.mxu0 %v328
    %369 = vmatprep.subr.mxu0 0.0
    %370 = vmatpush1.msra.mxu0 %v329
    %371 = vmatprep.subr.mxu0 0.0
    %372 = vmatpush1.msra.mxu0 %v330
    %373 = vmatprep.subr.mxu0 0.0
    %374 = vmatpush1.msra.mxu0 %v331
    %375 = vmatprep.subr.mxu0 0.0
    %376 = vmatpush1.msra.mxu0 %v332
    %377 = vmatprep.subr.mxu0 0.0
    %378 = vmatpush1.msra.mxu0 %v333
    %379 = vmatprep.subr.mxu0 0.0
    %380 = vmatpush1.msra.mxu0 %v334
    %381 = vmatprep.subr.mxu0 0.0
    %382 = vmatpush1.msra.mxu0 %v335
    %383 = vmatprep.subr.mxu0 0.0
    %384 = vmatpush1.msra.mxu0 %v336
    %385 = vmatprep.subr.mxu0 0.0
    %386 = vmatpush1.msra.mxu0 %v337
    %387 = vmatprep.subr.mxu0 0.0
    %388 = vmatpush1.msra.mxu0 %v338
    %389 = vmatprep.subr.mxu0 0.0
    %390 = vmatpush1.msra.mxu0 %v339
    %391 = vmatprep.subr.mxu0 0.0
    %392 = vmatpush1.msra.mxu0 %v340
    %393 = vmatprep.subr.mxu0 0.0
    %394 = vmatpush1.msra.mxu0 %v341
    %395 = vmatprep.subr.mxu0 0.0
    %396 = vmatpush1.msra.mxu0 %v342
    %397 = vmatprep.subr.mxu0 0.0
    %398 = vmatpush1.msra.mxu0 %v343
    %399 = vmatprep.subr.mxu0 0.0
    %400 = vmatpush1.msra.mxu0 %v344
    %401 = vmatprep.subr.mxu0 0.0
    %402 = vmatpush1.msra.mxu0 %v345
    %403 = vmatprep.subr.mxu0 0.0
    %404 = vmatpush1.msra.mxu0 %v346
    %405 = vmatprep.subr.mxu0 0.0
    %406 = vmatpush1.msra.mxu0 %v347
    %407 = vmatprep.subr.mxu0 0.0
    %408 = vmatpush1.msra.mxu0 %v348
    %409 = vmatprep.subr.mxu0 0.0
    %410 = vmatpush1.msra.mxu0 %v349
    %411 = vmatprep.subr.mxu0 0.0
    %412 = vmatpush1.msra.mxu0 %v350
    %413 = vmatprep.subr.mxu0 0.0
    %414 = vmatpush1.msra.mxu0 %v351
    %415 = vmatprep.subr.mxu0 0.0
    %416 = vmatpush1.msra.mxu0 %v352
    %417 = vmatprep.mubr.f32.mxu0 %v320
    %418 = vmatmul.mubr.f32.gmra.mrb[0].mxu0 %v319
    %v419 = vpop.f32.mrb[0].mxu0
    %v420 = vadd.f32 0.0, %v419
    %v421 = vpop.f32.mrb[0].mxu0
    %422 = vdwg.mxu0
    %v423 = vadd.f32 %v202, %v420
    %v424 = vld [vmem:[#allocation8 + $0x60] ss:$0 sm:$0xff]
    %v425 = vadd.f32 %v423, %v424
    %v426 = vsel %vm184, %v425, 0.0
    %427 = vadd.xlane.f32.xlu0 %v426
    %v428 = vpop.xlane.xlu0 %427
    %v429 = vmul.f32 %v428, %v188
    %v430 = vsub.f32 %v425, %v429
    %v431 = vmul.f32 %v430, %v430
    %v432 = vsel %vm184, %v431, 0.0
    %433 = vadd.xlane.f32.xlu0 %v432
    %v434 = vpop.xlane.xlu0 %433
    %v435 = vmul.f32 %v434, %v188
    %v436 = vadd.f32 %v435, 1e-05
    %v437 = vrsqrt.pop %v436
    %v438 = vmul.f32 %v430, %v437
    %v439 = vld [vmem:[#allocation5 + $0x180] sm:$0xff]
    %v440 = vld [vmem:[#allocation5 + $0x188] sm:$0xff]
    %v441 = vld [vmem:[#allocation5 + $0x190] sm:$0xff]
    %v442 = vld [vmem:[#allocation5 + $0x198] sm:$0xff]
    %v443 = vld [vmem:[#allocation5 + $0x1a0] sm:$0xff]
    %v444 = vld [vmem:[#allocation5 + $0x1a8] sm:$0xff]
    %v445 = vld [vmem:[#allocation5 + $0x1b0] sm:$0xff]
    %v446 = vld [vmem:[#allocation5 + $0x1b8] sm:$0xff]
    %v447 = vld [vmem:[#allocation5 + $0x1c0] sm:$0xff]
    %v448 = vld [vmem:[#allocation5 + $0x1c8] sm:$0xff]
    %v449 = vld [vmem:[#allocation5 + $0x1d0] sm:$0xff]
    %v450 = vld [vmem:[#allocation5 + $0x1d8] sm:$0xff]
    %v451 = vld [vmem:[#allocation5 + $0x1e0] sm:$0xff]
    %v452 = vld [vmem:[#allocation5 + $0x1e8] sm:$0xff]
    %v453 = vld [vmem:[#allocation5 + $0x1f0] sm:$0xff]
    %v454 = vld [vmem:[#allocation5 + $0x1f8] sm:$0xff]
    %v455 = vld [vmem:[#allocation8 + $0x70] ss:$0 sm:$0xff]
    %456 = vmatprep.subr.mxu0 0.0
    %457 = vmatpush1.msra.mxu0 %v439
    %458 = vmatprep.subr.mxu0 0.0
    %459 = vmatpush1.msra.mxu0 %v440
    %460 = vmatprep.subr.mxu0 0.0
    %461 = vmatpush1.msra.mxu0 %v441
    %462 = vmatprep.subr.mxu0 0.0
    %463 = vmatpush1.msra.mxu0 %v442
    %464 = vmatprep.subr.mxu0 0.0
    %465 = vmatpush1.msra.mxu0 %v443
    %466 = vmatprep.subr.mxu0 0.0
    %467 = vmatpush1.msra.mxu0 %v444
    %468 = vmatprep.subr.mxu0 0.0
    %469 = vmatpush1.msra.mxu0 %v445
    %470 = vmatprep.subr.mxu0 0.0
    %471 = vmatpush1.msra.mxu0 %v446
    %472 = vmatprep.subr.mxu0 0.0
    %473 = vmatpush1.msra.mxu0 %v447
    %474 = vmatprep.subr.mxu0 0.0
    %475 = vmatpush1.msra.mxu0 %v448
    %476 = vmatprep.subr.mxu0 0.0
    %477 = vmatpush1.msra.mxu0 %v449
    %478 = vmatprep.subr.mxu0 0.0
    %479 = vmatpush1.msra.mxu0 %v450
    %480 = vmatprep.subr.mxu0 0.0
    %481 = vmatpush1.msra.mxu0 %v451
    %482 = vmatprep.subr.mxu0 0.0
    %483 = vmatpush1.msra.mxu0 %v452
    %484 = vmatprep.subr.mxu0 0.0
    %485 = vmatpush1.msra.mxu0 %v453
    %486 = vmatprep.subr.mxu0 0.0
    %487 = vmatpush1.msra.mxu0 %v454
    %488 = vmatprep.subr.mxu0 0.0
    %489 = vmatpush1.msra.mxu0 0.0
    %490 = vmatprep.subr.mxu0 0.0
    %491 = vmatpush1.msra.mxu0 0.0
    %492 = vmatprep.subr.mxu0 0.0
    %493 = vmatpush1.msra.mxu0 0.0
    %494 = vmatprep.subr.mxu0 0.0
    %495 = vmatpush1.msra.mxu0 0.0
    %496 = vmatprep.subr.mxu0 0.0
    %497 = vmatpush1.msra.mxu0 0.0
    %498 = vmatprep.subr.mxu0 0.0
    %499 = vmatpush1.msra.mxu0 0.0
    %500 = vmatprep.subr.mxu0 0.0
    %501 = vmatpush1.msra.mxu0 0.0
    %502 = vmatprep.subr.mxu0 0.0
    %503 = vmatpush1.msra.mxu0 0.0
    %504 = vmatprep.subr.mxu0 0.0
    %505 = vmatpush1.msra.mxu0 0.0
    %506 = vmatprep.subr.mxu0 0.0
    %507 = vmatpush1.msra.mxu0 0.0
    %508 = vmatprep.subr.mxu0 0.0
    %509 = vmatpush1.msra.mxu0 0.0
    %510 = vmatprep.subr.mxu0 0.0
    %511 = vmatpush1.msra.mxu0 0.0
    %512 = vmatprep.subr.mxu0 0.0
    %513 = vmatpush1.msra.mxu0 0.0
    %514 = vmatprep.subr.mxu0 0.0
    %515 = vmatpush1.msra.mxu0 0.0
    %516 = vmatprep.subr.mxu0 0.0
    %517 = vmatpush1.msra.mxu0 0.0
    %518 = vmatprep.subr.mxu0 0.0
    %519 = vmatpush1.msra.mxu0 0.0
    %520 = vmatprep.mubr.f32.mxu0 0.0
    %521 = vmatmul.mubr.f32.gmra.mrb[0].mxu0 %v438
    %v522 = vpop.f32.mrb[0].mxu0
    %v523 = vadd.f32 %v455, %v522
    %v524 = vpop.f32.mrb[0].mxu0
    %525 = vdwg.mxu0
    %v526 = vmax.f32 %v523, 0.0
    %v527 = vld [vmem:[#allocation7 + $0x100] sm:$0xff]
    %v528 = vld [vmem:[#allocation7 + $0x108] sm:$0xff]
    %v529 = vld [vmem:[#allocation7 + $0x110] sm:$0xff]
    %v530 = vld [vmem:[#allocation7 + $0x118] sm:$0xff]
    %v531 = vld [vmem:[#allocation7 + $0x120] sm:$0xff]
    %v532 = vld [vmem:[#allocation7 + $0x128] sm:$0xff]
    %v533 = vld [vmem:[#allocation7 + $0x130] sm:$0xff]
    %v534 = vld [vmem:[#allocation7 + $0x138] sm:$0xff]
    %v535 = vld [vmem:[#allocation7 + $0x140] sm:$0xff]
    %v536 = vld [vmem:[#allocation7 + $0x148] sm:$0xff]
    %v537 = vld [vmem:[#allocation7 + $0x150] sm:$0xff]
    %v538 = vld [vmem:[#allocation7 + $0x158] sm:$0xff]
    %v539 = vld [vmem:[#allocation7 + $0x160] sm:$0xff]
    %v540 = vld [vmem:[#allocation7 + $0x168] sm:$0xff]
    %v541 = vld [vmem:[#allocation7 + $0x170] sm:$0xff]
    %v542 = vld [vmem:[#allocation7 + $0x178] sm:$0xff]
    %v543 = vld [vmem:[#allocation7 + $0x180] sm:$0xff]
    %v544 = vld [vmem:[#allocation7 + $0x188] sm:$0xff]
    %v545 = vld [vmem:[#allocation7 + $0x190] sm:$0xff]
    %v546 = vld [vmem:[#allocation7 + $0x198] sm:$0xff]
    %v547 = vld [vmem:[#allocation7 + $0x1a0] sm:$0xff]
    %v548 = vld [vmem:[#allocation7 + $0x1a8] sm:$0xff]
    %v549 = vld [vmem:[#allocation7 + $0x1b0] sm:$0xff]
    %v550 = vld [vmem:[#allocation7 + $0x1b8] sm:$0xff]
    %v551 = vld [vmem:[#allocation7 + $0x1c0] sm:$0xff]
    %v552 = vld [vmem:[#allocation7 + $0x1c8] sm:$0xff]
    %v553 = vld [vmem:[#allocation7 + $0x1d0] sm:$0xff]
    %v554 = vld [vmem:[#allocation7 + $0x1d8] sm:$0xff]
    %v555 = vld [vmem:[#allocation7 + $0x1e0] sm:$0xff]
    %v556 = vld [vmem:[#allocation7 + $0x1e8] sm:$0xff]
    %v557 = vld [vmem:[#allocation7 + $0x1f0] sm:$0xff]
    %v558 = vld [vmem:[#allocation7 + $0x1f8] sm:$0xff]
    %s559 = scalar_lea.vmem [#allocation8], 128
    %v560 = vld [vmem:[%s559] ss:$8 sm:$0x3]
    %v562 = vlaneseq
    %v563 = vshrl.u32 %v562, 7
    %v564 = vsub.s32 0, %v563
    %v565 = vrot.slane %v560, %v564
    %v566 = vlaneseq
    %v567 = vshrl.u32 %v566, 7
    %v568 = vsub.s32 1, %v567
    %v569 = vrot.slane %v560, %v568
    %572 = vmatprep.subr.mxu0 %v528
    %573 = vmatpush1.msra.mxu0 %v527
    %574 = vmatprep.subr.mxu0 %v530
    %575 = vmatpush1.msra.mxu0 %v529
    %576 = vmatprep.subr.mxu0 %v532
    %577 = vmatpush1.msra.mxu0 %v531
    %578 = vmatprep.subr.mxu0 %v534
    %579 = vmatpush1.msra.mxu0 %v533
    %580 = vmatprep.subr.mxu0 %v536
    %581 = vmatpush1.msra.mxu0 %v535
    %582 = vmatprep.subr.mxu0 %v538
    %583 = vmatpush1.msra.mxu0 %v537
    %584 = vmatprep.subr.mxu0 %v540
    %585 = vmatpush1.msra.mxu0 %v539
    %586 = vmatprep.subr.mxu0 %v542
    %587 = vmatpush1.msra.mxu0 %v541
    %588 = vmatprep.subr.mxu0 %v544
    %589 = vmatpush1.msra.mxu0 %v543
    %590 = vmatprep.subr.mxu0 %v546
    %591 = vmatpush1.msra.mxu0 %v545
    %592 = vmatprep.subr.mxu0 %v548
    %593 = vmatpush1.msra.mxu0 %v547
    %594 = vmatprep.subr.mxu0 %v550
    %595 = vmatpush1.msra.mxu0 %v549
    %596 = vmatprep.subr.mxu0 %v552
    %597 = vmatpush1.msra.mxu0 %v551
    %598 = vmatprep.subr.mxu0 %v554
    %599 = vmatpush1.msra.mxu0 %v553
    %600 = vmatprep.subr.mxu0 %v556
    %601 = vmatpush1.msra.mxu0 %v555
    %602 = vmatprep.subr.mxu0 %v558
    %603 = vmatpush1.msra.mxu0 %v557
    %604 = vmatprep.subr.mxu0 0.0
    %605 = vmatpush1.msra.mxu0 0.0
    %606 = vmatprep.subr.mxu0 0.0
    %607 = vmatpush1.msra.mxu0 0.0
    %608 = vmatprep.subr.mxu0 0.0
    %609 = vmatpush1.msra.mxu0 0.0
    %610 = vmatprep.subr.mxu0 0.0
    %611 = vmatpush1.msra.mxu0 0.0
    %612 = vmatprep.subr.mxu0 0.0
    %613 = vmatpush1.msra.mxu0 0.0
    %614 = vmatprep.subr.mxu0 0.0
    %615 = vmatpush1.msra.mxu0 0.0
    %616 = vmatprep.subr.mxu0 0.0
    %617 = vmatpush1.msra.mxu0 0.0
    %618 = vmatprep.subr.mxu0 0.0
    %619 = vmatpush1.msra.mxu0 0.0
    %620 = vmatprep.subr.mxu0 0.0
    %621 = vmatpush1.msra.mxu0 0.0
    %622 = vmatprep.subr.mxu0 0.0
    %623 = vmatpush1.msra.mxu0 0.0
    %624 = vmatprep.subr.mxu0 0.0
    %625 = vmatpush1.msra.mxu0 0.0
    %626 = vmatprep.subr.mxu0 0.0
    %627 = vmatpush1.msra.mxu0 0.0
    %628 = vmatprep.subr.mxu0 0.0
    %629 = vmatpush1.msra.mxu0 0.0
    %630 = vmatprep.subr.mxu0 0.0
    %631 = vmatpush1.msra.mxu0 0.0
    %632 = vmatprep.subr.mxu0 0.0
    %633 = vmatpush1.msra.mxu0 0.0
    %634 = vmatprep.subr.mxu0 0.0
    %635 = vmatpush1.msra.mxu0 0.0
    %636 = vmatprep.mubr.f32.mxu0 0.0
    %637 = vmatmul.mubr.f32.gmra.mrb[0].mxu0 %v526
    %v638 = vpop.f32.mrb[0].mxu0
    %v639 = vadd.f32 %v565, %v638
    %v640 = vpop.f32.mrb[0].mxu0
    %v641 = vadd.f32 %v569, %v640
    %642 = vdwg.mxu0
    %v643 = vmax.f32 %v639, 0.0
    %v644 = vmax.f32 %v641, 0.0
    %v645 = vld [vmem:[#allocation5 + $0x200] sm:$0xff]
    %v646 = vld [vmem:[#allocation5 + $0x208] sm:$0xff]
    %v647 = vld [vmem:[#allocation5 + $0x210] sm:$0xff]
    %v648 = vld [vmem:[#allocation5 + $0x218] sm:$0xff]
    %v649 = vld [vmem:[#allocation5 + $0x220] sm:$0xff]
    %v650 = vld [vmem:[#allocation5 + $0x228] sm:$0xff]
    %v651 = vld [vmem:[#allocation5 + $0x230] sm:$0xff]
    %v652 = vld [vmem:[#allocation5 + $0x238] sm:$0xff]
    %v653 = vld [vmem:[#allocation5 + $0x240] sm:$0xff]
    %v654 = vld [vmem:[#allocation5 + $0x248] sm:$0xff]
    %v655 = vld [vmem:[#allocation5 + $0x250] sm:$0xff]
    %v656 = vld [vmem:[#allocation5 + $0x258] sm:$0xff]
    %v657 = vld [vmem:[#allocation5 + $0x260] sm:$0xff]
    %v658 = vld [vmem:[#allocation5 + $0x268] sm:$0xff]
    %v659 = vld [vmem:[#allocation5 + $0x270] sm:$0xff]
    %v660 = vld [vmem:[#allocation5 + $0x278] sm:$0xff]
    %v661 = vld [vmem:[#allocation5 + $0x280] sm:$0xff]
    %v662 = vld [vmem:[#allocation5 + $0x288] sm:$0xff]
    %v663 = vld [vmem:[#allocation5 + $0x290] sm:$0xff]
    %v664 = vld [vmem:[#allocation5 + $0x298] sm:$0xff]
    %v665 = vld [vmem:[#allocation5 + $0x2a0] sm:$0xff]
    %v666 = vld [vmem:[#allocation5 + $0x2a8] sm:$0xff]
    %v667 = vld [vmem:[#allocation5 + $0x2b0] sm:$0xff]
    %v668 = vld [vmem:[#allocation5 + $0x2b8] sm:$0xff]
    %v669 = vld [vmem:[#allocation5 + $0x2c0] sm:$0xff]
    %v670 = vld [vmem:[#allocation5 + $0x2c8] sm:$0xff]
    %v671 = vld [vmem:[#allocation5 + $0x2d0] sm:$0xff]
    %v672 = vld [vmem:[#allocation5 + $0x2d8] sm:$0xff]
    %v673 = vld [vmem:[#allocation5 + $0x2e0] sm:$0xff]
    %v674 = vld [vmem:[#allocation5 + $0x2e8] sm:$0xff]
    %v675 = vld [vmem:[#allocation5 + $0x2f0] sm:$0xff]
    %v676 = vld [vmem:[#allocation5 + $0x2f8] sm:$0xff]
    %v677 = vld [vmem:[#allocation8 + $0x90] ss:$0 sm:$0xff]
    %678 = vmatprep.subr.mxu0 0.0
    %679 = vmatpush1.msra.mxu0 %v645
    %680 = vmatprep.subr.mxu0 0.0
    %681 = vmatpush1.msra.mxu0 %v646
    %682 = vmatprep.subr.mxu0 0.0
    %683 = vmatpush1.msra.mxu0 %v647
    %684 = vmatprep.subr.mxu0 0.0
    %685 = vmatpush1.msra.mxu0 %v648
    %686 = vmatprep.subr.mxu0 0.0
    %687 = vmatpush1.msra.mxu0 %v649
    %688 = vmatprep.subr.mxu0 0.0
    %689 = vmatpush1.msra.mxu0 %v650
    %690 = vmatprep.subr.mxu0 0.0
    %691 = vmatpush1.msra.mxu0 %v651
    %692 = vmatprep.subr.mxu0 0.0
    %693 = vmatpush1.msra.mxu0 %v652
    %694 = vmatprep.subr.mxu0 0.0
    %695 = vmatpush1.msra.mxu0 %v653
    %696 = vmatprep.subr.mxu0 0.0
    %697 = vmatpush1.msra.mxu0 %v654
    %698 = vmatprep.subr.mxu0 0.0
    %699 = vmatpush1.msra.mxu0 %v655
    %700 = vmatprep.subr.mxu0 0.0
    %701 = vmatpush1.msra.mxu0 %v656
    %702 = vmatprep.subr.mxu0 0.0
    %703 = vmatpush1.msra.mxu0 %v657
    %704 = vmatprep.subr.mxu0 0.0
    %705 = vmatpush1.msra.mxu0 %v658
    %706 = vmatprep.subr.mxu0 0.0
    %707 = vmatpush1.msra.mxu0 %v659
    %708 = vmatprep.subr.mxu0 0.0
    %709 = vmatpush1.msra.mxu0 %v660
    %710 = vmatprep.subr.mxu0 0.0
    %711 = vmatpush1.msra.mxu0 %v661
    %712 = vmatprep.subr.mxu0 0.0
    %713 = vmatpush1.msra.mxu0 %v662
    %714 = vmatprep.subr.mxu0 0.0
    %715 = vmatpush1.msra.mxu0 %v663
    %716 = vmatprep.subr.mxu0 0.0
    %717 = vmatpush1.msra.mxu0 %v664
    %718 = vmatprep.subr.mxu0 0.0
    %719 = vmatpush1.msra.mxu0 %v665
    %720 = vmatprep.subr.mxu0 0.0
    %721 = vmatpush1.msra.mxu0 %v666
    %722 = vmatprep.subr.mxu0 0.0
    %723 = vmatpush1.msra.mxu0 %v667
    %724 = vmatprep.subr.mxu0 0.0
    %725 = vmatpush1.msra.mxu0 %v668
    %726 = vmatprep.subr.mxu0 0.0
    %727 = vmatpush1.msra.mxu0 %v669
    %728 = vmatprep.subr.mxu0 0.0
    %729 = vmatpush1.msra.mxu0 %v670
    %730 = vmatprep.subr.mxu0 0.0
    %731 = vmatpush1.msra.mxu0 %v671
    %732 = vmatprep.subr.mxu0 0.0
    %733 = vmatpush1.msra.mxu0 %v672
    %734 = vmatprep.subr.mxu0 0.0
    %735 = vmatpush1.msra.mxu0 %v673
    %736 = vmatprep.subr.mxu0 0.0
    %737 = vmatpush1.msra.mxu0 %v674
    %738 = vmatprep.subr.mxu0 0.0
    %739 = vmatpush1.msra.mxu0 %v675
    %740 = vmatprep.subr.mxu0 0.0
    %741 = vmatpush1.msra.mxu0 %v676
    %742 = vmatprep.mubr.f32.mxu0 %v644
    %743 = vmatmul.mubr.f32.gmra.mrb[0].mxu0 %v643
    %v744 = vpop.f32.mrb[0].mxu0
    %v745 = vadd.f32 %v677, %v744
    %v746 = vpop.f32.mrb[0].mxu0
    %747 = vdwg.mxu0
    %v748 = vmax.f32 %v745, 0.0
    %v749 = vld [vmem:[#allocation5 + $0x300] sm:$0xff]
    %v750 = vld [vmem:[#allocation5 + $0x308] sm:$0xff]
    %v751 = vld [vmem:[#allocation5 + $0x310] sm:$0xff]
    %v752 = vld [vmem:[#allocation5 + $0x318] sm:$0xff]
    %v753 = vld [vmem:[#allocation5 + $0x320] sm:$0xff]
    %v754 = vld [vmem:[#allocation5 + $0x328] sm:$0xff]
    %v755 = vld [vmem:[#allocation5 + $0x330] sm:$0xff]
    %v756 = vld [vmem:[#allocation5 + $0x338] sm:$0xff]
    %v757 = vld [vmem:[#allocation5 + $0x340] sm:$0xff]
    %v758 = vld [vmem:[#allocation5 + $0x348] sm:$0xff]
    %v759 = vld [vmem:[#allocation5 + $0x350] sm:$0xff]
    %v760 = vld [vmem:[#allocation5 + $0x358] sm:$0xff]
    %v761 = vld [vmem:[#allocation5 + $0x360] sm:$0xff]
    %v762 = vld [vmem:[#allocation5 + $0x368] sm:$0xff]
    %v763 = vld [vmem:[#allocation5 + $0x370] sm:$0xff]
    %v764 = vld [vmem:[#allocation5 + $0x378] sm:$0xff]
    %v765 = vld [vmem:[#allocation5 + $0x380] sm:$0xff]
    %v766 = vld [vmem:[#allocation5 + $0x388] sm:$0xff]
    %v767 = vld [vmem:[#allocation5 + $0x390] sm:$0xff]
    %v768 = vld [vmem:[#allocation5 + $0x398] sm:$0xff]
    %769 = vmatprep.subr.mxu0 0.0
    %770 = vmatpush1.msra.mxu0 %v753
    %771 = vmatprep.subr.mxu0 0.0
    %772 = vmatpush1.msra.mxu0 %v754
    %773 = vmatprep.subr.mxu0 0.0
    %774 = vmatpush1.msra.mxu0 %v755
    %775 = vmatprep.subr.mxu0 0.0
    %776 = vmatpush1.msra.mxu0 %v756
    %777 = vmatprep.subr.mxu0 0.0
    %778 = vmatpush1.msra.mxu0 %v757
    %779 = vmatprep.subr.mxu0 0.0
    %780 = vmatpush1.msra.mxu0 %v758
    %781 = vmatprep.subr.mxu0 0.0
    %782 = vmatpush1.msra.mxu0 %v759
    %783 = vmatprep.subr.mxu0 0.0
    %784 = vmatpush1.msra.mxu0 %v760
    %785 = vmatprep.subr.mxu0 0.0
    %786 = vmatpush1.msra.mxu0 %v761
    %787 = vmatprep.subr.mxu0 0.0
    %788 = vmatpush1.msra.mxu0 %v762
    %789 = vmatprep.subr.mxu0 0.0
    %790 = vmatpush1.msra.mxu0 %v763
    %791 = vmatprep.subr.mxu0 0.0
    %792 = vmatpush1.msra.mxu0 %v764
    %793 = vmatprep.subr.mxu0 0.0
    %794 = vmatpush1.msra.mxu0 %v765
    %795 = vmatprep.subr.mxu0 0.0
    %796 = vmatpush1.msra.mxu0 %v766
    %797 = vmatprep.subr.mxu0 0.0
    %798 = vmatpush1.msra.mxu0 %v767
    %799 = vmatprep.subr.mxu0 0.0
    %800 = vmatpush1.msra.mxu0 %v768
    %801 = vmatprep.subr.mxu0 0.0
    %802 = vmatpush1.msra.mxu0 0.0
    %803 = vmatprep.subr.mxu0 0.0
    %804 = vmatpush1.msra.mxu0 0.0
    %805 = vmatprep.subr.mxu0 0.0
    %806 = vmatpush1.msra.mxu0 0.0
    %807 = vmatprep.subr.mxu0 0.0
    %808 = vmatpush1.msra.mxu0 0.0
    %809 = vmatprep.subr.mxu0 0.0
    %810 = vmatpush1.msra.mxu0 0.0
    %811 = vmatprep.subr.mxu0 0.0
    %812 = vmatpush1.msra.mxu0 0.0
    %813 = vmatprep.subr.mxu0 0.0
    %814 = vmatpush1.msra.mxu0 0.0
    %815 = vmatprep.subr.mxu0 0.0
    %816 = vmatpush1.msra.mxu0 0.0
    %817 = vmatprep.subr.mxu0 0.0
    %818 = vmatpush1.msra.mxu0 0.0
    %819 = vmatprep.subr.mxu0 0.0
    %820 = vmatpush1.msra.mxu0 0.0
    %821 = vmatprep.subr.mxu0 0.0
    %822 = vmatpush1.msra.mxu0 0.0
    %823 = vmatprep.subr.mxu0 0.0
    %824 = vmatpush1.msra.mxu0 0.0
    %825 = vmatprep.subr.mxu0 0.0
    %826 = vmatpush1.msra.mxu0 0.0
    %827 = vmatprep.subr.mxu0 0.0
    %828 = vmatpush1.msra.mxu0 0.0
    %829 = vmatprep.subr.mxu0 0.0
    %830 = vmatpush1.msra.mxu0 0.0
    %831 = vmatprep.subr.mxu0 0.0
    %832 = vmatpush1.msra.mxu0 0.0
    %833 = vmatprep.mubr.f32.mxu0 0.0
    %834 = vmatmul.mubr.f32.gmra.mrb[0].mxu0 %v748
    %v835 = vpop.f32.mrb[0].mxu0
    %v836 = vadd.f32 0.0, %v835
    %v837 = vpop.f32.mrb[0].mxu0
    %838 = vdwg.mxu0
    %vm839 = vcmask 261120
    %v840 = vsel %vm839, %v71, 0
    %842 = vmatprep.subr.mxu0 0.0
    %843 = vmatpush1.msra.mxu0 %v749
    %844 = vmatprep.subr.mxu0 0.0
    %845 = vmatpush1.msra.mxu0 %v750
    %846 = vmatprep.subr.mxu0 0.0
    %847 = vmatpush1.msra.mxu0 %v751
    %848 = vmatprep.subr.mxu0 0.0
    %849 = vmatpush1.msra.mxu0 %v752
    %850 = vmatprep.subr.mxu0 0.0
    %851 = vmatpush1.msra.mxu0 0.0
    %852 = vmatprep.subr.mxu0 0.0
    %853 = vmatpush1.msra.mxu0 0.0
    %854 = vmatprep.subr.mxu0 0.0
    %855 = vmatpush1.msra.mxu0 0.0
    %856 = vmatprep.subr.mxu0 0.0
    %857 = vmatpush1.msra.mxu0 0.0
    %858 = vmatprep.subr.mxu0 0.0
    %859 = vmatpush1.msra.mxu0 0.0
    %860 = vmatprep.subr.mxu0 0.0
    %861 = vmatpush1.msra.mxu0 0.0
    %862 = vmatprep.subr.mxu0 0.0
    %863 = vmatpush1.msra.mxu0 0.0
    %864 = vmatprep.subr.mxu0 0.0
    %865 = vmatpush1.msra.mxu0 0.0
    %866 = vmatprep.subr.mxu0 0.0
    %867 = vmatpush1.msra.mxu0 0.0
    %868 = vmatprep.subr.mxu0 0.0
    %869 = vmatpush1.msra.mxu0 0.0
    %870 = vmatprep.subr.mxu0 0.0
    %871 = vmatpush1.msra.mxu0 0.0
    %872 = vmatprep.subr.mxu0 0.0
    %873 = vmatpush1.msra.mxu0 0.0
    %874 = vmatprep.subr.mxu0 0.0
    %875 = vmatpush1.msra.mxu0 0.0
    %876 = vmatprep.subr.mxu0 0.0
    %877 = vmatpush1.msra.mxu0 0.0
    %878 = vmatprep.subr.mxu0 0.0
    %879 = vmatpush1.msra.mxu0 0.0
    %880 = vmatprep.subr.mxu0 0.0
    %881 = vmatpush1.msra.mxu0 0.0
    %882 = vmatprep.subr.mxu0 0.0
    %883 = vmatpush1.msra.mxu0 0.0
    %884 = vmatprep.subr.mxu0 0.0
    %885 = vmatpush1.msra.mxu0 0.0
    %886 = vmatprep.subr.mxu0 0.0
    %887 = vmatpush1.msra.mxu0 0.0
    %888 = vmatprep.subr.mxu0 0.0
    %889 = vmatpush1.msra.mxu0 0.0
    %890 = vmatprep.subr.mxu0 0.0
    %891 = vmatpush1.msra.mxu0 0.0
    %892 = vmatprep.subr.mxu0 0.0
    %893 = vmatpush1.msra.mxu0 0.0
    %894 = vmatprep.subr.mxu0 0.0
    %895 = vmatpush1.msra.mxu0 0.0
    %896 = vmatprep.subr.mxu0 0.0
    %897 = vmatpush1.msra.mxu0 0.0
    %898 = vmatprep.subr.mxu0 0.0
    %899 = vmatpush1.msra.mxu0 0.0
    %900 = vmatprep.subr.mxu0 0.0
    %901 = vmatpush1.msra.mxu0 0.0
    %902 = vmatprep.subr.mxu0 0.0
    %903 = vmatpush1.msra.mxu0 0.0
    %904 = vmatprep.subr.mxu0 0.0
    %905 = vmatpush1.msra.mxu0 0.0
    %906 = vmatprep.mubr.f32.mxu0 0.0
    %907 = vmatmul.mubr.f32.gmra.mrb[0].mxu0 %v840
    %v908 = vpop.f32.mrb[0].mxu0
    %v909 = vadd.f32 %v836, %v908
    %v910 = vpop.f32.mrb[0].mxu0
    %911 = vdwg.mxu0
    %v912 = vld [vmem:[#allocation8 + $0xa0] ss:$0 sm:$0xff]
    %v913 = vadd.f32 %v909, %v912
    %v914 = vmax.f32 %v913, 0.0
    %v915 = vld [vmem:[#allocation5 + $0x3a0] sm:$0xff]
    %v916 = vld [vmem:[#allocation5 + $0x3a8] sm:$0xff]
    %v917 = vld [vmem:[#allocation5 + $0x3b0] sm:$0xff]
    %v918 = vld [vmem:[#allocation5 + $0x3b8] sm:$0xff]
    %v919 = vld [vmem:[#allocation5 + $0x3c0] sm:$0xff]
    %v920 = vld [vmem:[#allocation5 + $0x3c8] sm:$0xff]
    %v921 = vld [vmem:[#allocation5 + $0x3d0] sm:$0xff]
    %v922 = vld [vmem:[#allocation5 + $0x3d8] sm:$0xff]
    %v923 = vld [vmem:[#allocation5 + $0x3e0] sm:$0xff]
    %v924 = vld [vmem:[#allocation5 + $0x3e8] sm:$0xff]
    %v925 = vld [vmem:[#allocation5 + $0x3f0] sm:$0xff]
    %v926 = vld [vmem:[#allocation5 + $0x3f8] sm:$0xff]
    %v927 = vld [vmem:[#allocation5 + $0x400] sm:$0xff]
    %v928 = vld [vmem:[#allocation5 + $0x408] sm:$0xff]
    %v929 = vld [vmem:[#allocation5 + $0x410] sm:$0xff]
    %v930 = vld [vmem:[#allocation5 + $0x418] sm:$0xff]
    %v931 = vld [vmem:[#allocation8 + $0xb0] ss:$0 sm:$0xff]
    %932 = vmatprep.subr.mxu0 0.0
    %933 = vmatpush1.msra.mxu0 %v915
    %934 = vmatprep.subr.mxu0 0.0
    %935 = vmatpush1.msra.mxu0 %v916
    %936 = vmatprep.subr.mxu0 0.0
    %937 = vmatpush1.msra.mxu0 %v917
    %938 = vmatprep.subr.mxu0 0.0
    %939 = vmatpush1.msra.mxu0 %v918
    %940 = vmatprep.subr.mxu0 0.0
    %941 = vmatpush1.msra.mxu0 %v919
    %942 = vmatprep.subr.mxu0 0.0
    %943 = vmatpush1.msra.mxu0 %v920
    %944 = vmatprep.subr.mxu0 0.0
    %945 = vmatpush1.msra.mxu0 %v921
    %946 = vmatprep.subr.mxu0 0.0
    %947 = vmatpush1.msra.mxu0 %v922
    %948 = vmatprep.subr.mxu0 0.0
    %949 = vmatpush1.msra.mxu0 %v923
    %950 = vmatprep.subr.mxu0 0.0
    %951 = vmatpush1.msra.mxu0 %v924
    %952 = vmatprep.subr.mxu0 0.0
    %953 = vmatpush1.msra.mxu0 %v925
    %954 = vmatprep.subr.mxu0 0.0
    %955 = vmatpush1.msra.mxu0 %v926
    %956 = vmatprep.subr.mxu0 0.0
    %957 = vmatpush1.msra.mxu0 %v927
    %958 = vmatprep.subr.mxu0 0.0
    %959 = vmatpush1.msra.mxu0 %v928
    %960 = vmatprep.subr.mxu0 0.0
    %961 = vmatpush1.msra.mxu0 %v929
    %962 = vmatprep.subr.mxu0 0.0
    %963 = vmatpush1.msra.mxu0 %v930
    %964 = vmatprep.subr.mxu0 0.0
    %965 = vmatpush1.msra.mxu0 0.0
    %966 = vmatprep.subr.mxu0 0.0
    %967 = vmatpush1.msra.mxu0 0.0
    %968 = vmatprep.subr.mxu0 0.0
    %969 = vmatpush1.msra.mxu0 0.0
    %970 = vmatprep.subr.mxu0 0.0
    %971 = vmatpush1.msra.mxu0 0.0
    %972 = vmatprep.subr.mxu0 0.0
    %973 = vmatpush1.msra.mxu0 0.0
    %974 = vmatprep.subr.mxu0 0.0
    %975 = vmatpush1.msra.mxu0 0.0
    %976 = vmatprep.subr.mxu0 0.0
    %977 = vmatpush1.msra.mxu0 0.0
    %978 = vmatprep.subr.mxu0 0.0
    %979 = vmatpush1.msra.mxu0 0.0
    %980 = vmatprep.subr.mxu0 0.0
    %981 = vmatpush1.msra.mxu0 0.0
    %982 = vmatprep.subr.mxu0 0.0
    %983 = vmatpush1.msra.mxu0 0.0
    %984 = vmatprep.subr.mxu0 0.0
    %985 = vmatpush1.msra.mxu0 0.0
    %986 = vmatprep.subr.mxu0 0.0
    %987 = vmatpush1.msra.mxu0 0.0
    %988 = vmatprep.subr.mxu0 0.0
    %989 = vmatpush1.msra.mxu0 0.0
    %990 = vmatprep.subr.mxu0 0.0
    %991 = vmatpush1.msra.mxu0 0.0
    %992 = vmatprep.subr.mxu0 0.0
    %993 = vmatpush1.msra.mxu0 0.0
    %994 = vmatprep.subr.mxu0 0.0
    %995 = vmatpush1.msra.mxu0 0.0
    %996 = vmatprep.mubr.f32.mxu0 0.0
    %997 = vmatmul.mubr.f32.gmra.mrb[0].mxu0 %v914
    %v998 = vpop.f32.mrb[0].mxu0
    %v999 = vadd.f32 %v931, %v998
    %v1000 = vpop.f32.mrb[0].mxu0
    %1001 = vdwg.mxu0
    %v1002 = vmax.f32 %v999, 0.0
    %v1003 = vld [vmem:[#allocation5 + $0x420] sm:$0xff]
    %v1004 = vld [vmem:[#allocation5 + $0x428] sm:$0xff]
    %v1005 = vld [vmem:[#allocation5 + $0x430] sm:$0xff]
    %v1006 = vld [vmem:[#allocation5 + $0x438] sm:$0xff]
    %v1007 = vld [vmem:[#allocation5 + $0x440] sm:$0xff]
    %v1008 = vld [vmem:[#allocation5 + $0x448] sm:$0xff]
    %v1009 = vld [vmem:[#allocation5 + $0x450] sm:$0xff]
    %v1010 = vld [vmem:[#allocation5 + $0x458] sm:$0xff]
    %v1011 = vld [vmem:[#allocation5 + $0x460] sm:$0xff]
    %v1012 = vld [vmem:[#allocation5 + $0x468] sm:$0xff]
    %v1013 = vld [vmem:[#allocation5 + $0x470] sm:$0xff]
    %v1014 = vld [vmem:[#allocation5 + $0x478] sm:$0xff]
    %v1015 = vld [vmem:[#allocation5 + $0x480] sm:$0xff]
    %v1016 = vld [vmem:[#allocation5 + $0x488] sm:$0xff]
    %v1017 = vld [vmem:[#allocation5 + $0x490] sm:$0xff]
    %v1018 = vld [vmem:[#allocation5 + $0x498] sm:$0xff]
    %v1019 = vld [vmem:[#allocation8 + $0xc0] ss:$0 sm:$0xff]
    %1020 = vmatprep.subr.mxu0 0.0
    %1021 = vmatpush1.msra.mxu0 %v1003
    %1022 = vmatprep.subr.mxu0 0.0
    %1023 = vmatpush1.msra.mxu0 %v1004
    %1024 = vmatprep.subr.mxu0 0.0
    %1025 = vmatpush1.msra.mxu0 %v1005
    %1026 = vmatprep.subr.mxu0 0.0
    %1027 = vmatpush1.msra.mxu0 %v1006
    %1028 = vmatprep.subr.mxu0 0.0
    %1029 = vmatpush1.msra.mxu0 %v1007
    %1030 = vmatprep.subr.mxu0 0.0
    %1031 = vmatpush1.msra.mxu0 %v1008
    %1032 = vmatprep.subr.mxu0 0.0
    %1033 = vmatpush1.msra.mxu0 %v1009
    %1034 = vmatprep.subr.mxu0 0.0
    %1035 = vmatpush1.msra.mxu0 %v1010
    %1036 = vmatprep.subr.mxu0 0.0
    %1037 = vmatpush1.msra.mxu0 %v1011
    %1038 = vmatprep.subr.mxu0 0.0
    %1039 = vmatpush1.msra.mxu0 %v1012
    %1040 = vmatprep.subr.mxu0 0.0
    %1041 = vmatpush1.msra.mxu0 %v1013
    %1042 = vmatprep.subr.mxu0 0.0
    %1043 = vmatpush1.msra.mxu0 %v1014
    %1044 = vmatprep.subr.mxu0 0.0
    %1045 = vmatpush1.msra.mxu0 %v1015
    %1046 = vmatprep.subr.mxu0 0.0
    %1047 = vmatpush1.msra.mxu0 %v1016
    %1048 = vmatprep.subr.mxu0 0.0
    %1049 = vmatpush1.msra.mxu0 %v1017
    %1050 = vmatprep.subr.mxu0 0.0
    %1051 = vmatpush1.msra.mxu0 %v1018
    %1052 = vmatprep.subr.mxu0 0.0
    %1053 = vmatpush1.msra.mxu0 0.0
    %1054 = vmatprep.subr.mxu0 0.0
    %1055 = vmatpush1.msra.mxu0 0.0
    %1056 = vmatprep.subr.mxu0 0.0
    %1057 = vmatpush1.msra.mxu0 0.0
    %1058 = vmatprep.subr.mxu0 0.0
    %1059 = vmatpush1.msra.mxu0 0.0
    %1060 = vmatprep.subr.mxu0 0.0
    %1061 = vmatpush1.msra.mxu0 0.0
    %1062 = vmatprep.subr.mxu0 0.0
    %1063 = vmatpush1.msra.mxu0 0.0
    %1064 = vmatprep.subr.mxu0 0.0
    %1065 = vmatpush1.msra.mxu0 0.0
    %1066 = vmatprep.subr.mxu0 0.0
    %1067 = vmatpush1.msra.mxu0 0.0
    %1068 = vmatprep.subr.mxu0 0.0
    %1069 = vmatpush1.msra.mxu0 0.0
    %1070 = vmatprep.subr.mxu0 0.0
    %1071 = vmatpush1.msra.mxu0 0.0
    %1072 = vmatprep.subr.mxu0 0.0
    %1073 = vmatpush1.msra.mxu0 0.0
    %1074 = vmatprep.subr.mxu0 0.0
    %1075 = vmatpush1.msra.mxu0 0.0
    %1076 = vmatprep.subr.mxu0 0.0
    %1077 = vmatpush1.msra.mxu0 0.0
    %1078 = vmatprep.subr.mxu0 0.0
    %1079 = vmatpush1.msra.mxu0 0.0
    %1080 = vmatprep.subr.mxu0 0.0
    %1081 = vmatpush1.msra.mxu0 0.0
    %1082 = vmatprep.subr.mxu0 0.0
    %1083 = vmatpush1.msra.mxu0 0.0
    %1084 = vmatprep.mubr.f32.mxu0 0.0
    %1085 = vmatmul.mubr.f32.gmra.mrb[0].mxu0 %v1002
    %v1086 = vpop.f32.mrb[0].mxu0
    %v1087 = vadd.f32 %v1019, %v1086
    %v1088 = vpop.f32.mrb[0].mxu0
    %1089 = vdwg.mxu0
    %v1090 = vmax.f32 %v1087, 0.0
    %v1091 = vld [vmem:[#allocation5 + $0x4a0] sm:$0xff]
    %v1092 = vld [vmem:[#allocation5 + $0x4a8] sm:$0xff]
    %v1093 = vld [vmem:[#allocation5 + $0x4b0] sm:$0xff]
    %v1094 = vld [vmem:[#allocation5 + $0x4b8] sm:$0xff]
    %v1095 = vld [vmem:[#allocation5 + $0x4c0] sm:$0xff]
    %v1096 = vld [vmem:[#allocation5 + $0x4c8] sm:$0xff]
    %v1097 = vld [vmem:[#allocation5 + $0x4d0] sm:$0xff]
    %v1098 = vld [vmem:[#allocation5 + $0x4d8] sm:$0xff]
    %v1099 = vld [vmem:[#allocation5 + $0x4e0] sm:$0xff]
    %v1100 = vld [vmem:[#allocation5 + $0x4e8] sm:$0xff]
    %v1101 = vld [vmem:[#allocation5 + $0x4f0] sm:$0xff]
    %v1102 = vld [vmem:[#allocation5 + $0x4f8] sm:$0xff]
    %v1103 = vld [vmem:[#allocation5 + $0x500] sm:$0xff]
    %v1104 = vld [vmem:[#allocation5 + $0x508] sm:$0xff]
    %v1105 = vld [vmem:[#allocation5 + $0x510] sm:$0xff]
    %v1106 = vld [vmem:[#allocation5 + $0x518] sm:$0xff]
    %v1107 = vld [vmem:[#allocation8 + $0xd0] ss:$0 sm:$0xff]
    %1108 = vmatprep.subr.mxu0 0.0
    %1109 = vmatpush1.msra.mxu0 %v1091
    %1110 = vmatprep.subr.mxu0 0.0
    %1111 = vmatpush1.msra.mxu0 %v1092
    %1112 = vmatprep.subr.mxu0 0.0
    %1113 = vmatpush1.msra.mxu0 %v1093
    %1114 = vmatprep.subr.mxu0 0.0
    %1115 = vmatpush1.msra.mxu0 %v1094
    %1116 = vmatprep.subr.mxu0 0.0
    %1117 = vmatpush1.msra.mxu0 %v1095
    %1118 = vmatprep.subr.mxu0 0.0
    %1119 = vmatpush1.msra.mxu0 %v1096
    %1120 = vmatprep.subr.mxu0 0.0
    %1121 = vmatpush1.msra.mxu0 %v1097
    %1122 = vmatprep.subr.mxu0 0.0
    %1123 = vmatpush1.msra.mxu0 %v1098
    %1124 = vmatprep.subr.mxu0 0.0
    %1125 = vmatpush1.msra.mxu0 %v1099
    %1126 = vmatprep.subr.mxu0 0.0
    %1127 = vmatpush1.msra.mxu0 %v1100
    %1128 = vmatprep.subr.mxu0 0.0
    %1129 = vmatpush1.msra.mxu0 %v1101
    %1130 = vmatprep.subr.mxu0 0.0
    %1131 = vmatpush1.msra.mxu0 %v1102
    %1132 = vmatprep.subr.mxu0 0.0
    %1133 = vmatpush1.msra.mxu0 %v1103
    %1134 = vmatprep.subr.mxu0 0.0
    %1135 = vmatpush1.msra.mxu0 %v1104
    %1136 = vmatprep.subr.mxu0 0.0
    %1137 = vmatpush1.msra.mxu0 %v1105
    %1138 = vmatprep.subr.mxu0 0.0
    %1139 = vmatpush1.msra.mxu0 %v1106
    %1140 = vmatprep.subr.mxu0 0.0
    %1141 = vmatpush1.msra.mxu0 0.0
    %1142 = vmatprep.subr.mxu0 0.0
    %1143 = vmatpush1.msra.mxu0 0.0
    %1144 = vmatprep.subr.mxu0 0.0
    %1145 = vmatpush1.msra.mxu0 0.0
    %1146 = vmatprep.subr.mxu0 0.0
    %1147 = vmatpush1.msra.mxu0 0.0
    %1148 = vmatprep.subr.mxu0 0.0
    %1149 = vmatpush1.msra.mxu0 0.0
    %1150 = vmatprep.subr.mxu0 0.0
    %1151 = vmatpush1.msra.mxu0 0.0
    %1152 = vmatprep.subr.mxu0 0.0
    %1153 = vmatpush1.msra.mxu0 0.0
    %1154 = vmatprep.subr.mxu0 0.0
    %1155 = vmatpush1.msra.mxu0 0.0
    %1156 = vmatprep.subr.mxu0 0.0
    %1157 = vmatpush1.msra.mxu0 0.0
    %1158 = vmatprep.subr.mxu0 0.0
    %1159 = vmatpush1.msra.mxu0 0.0
    %1160 = vmatprep.subr.mxu0 0.0
    %1161 = vmatpush1.msra.mxu0 0.0
    %1162 = vmatprep.subr.mxu0 0.0
    %1163 = vmatpush1.msra.mxu0 0.0
    %1164 = vmatprep.subr.mxu0 0.0
    %1165 = vmatpush1.msra.mxu0 0.0
    %1166 = vmatprep.subr.mxu0 0.0
    %1167 = vmatpush1.msra.mxu0 0.0
    %1168 = vmatprep.subr.mxu0 0.0
    %1169 = vmatpush1.msra.mxu0 0.0
    %1170 = vmatprep.subr.mxu0 0.0
    %1171 = vmatpush1.msra.mxu0 0.0
    %1172 = vmatprep.mubr.f32.mxu0 0.0
    %1173 = vmatmul.mubr.f32.gmra.mrb[0].mxu0 %v1090
    %v1174 = vpop.f32.mrb[0].mxu0
    %v1175 = vadd.f32 %v1107, %v1174
    %v1176 = vpop.f32.mrb[0].mxu0
    %1177 = vdwg.mxu0
    %1178 = vst [vmem:[#allocation10] sm:$0x3] %v1175
    // Predicated region
    $region34: #{tpu_custom_call.1} parent=1 // pred_check
      _
    $region35: #{tpu_custom_call.1} parent=1 // pred_check_branch
      %1180 = sbr.rel (0) target = $region37
    $region36: #{tpu_custom_call.1} parent=1 // pred_region
      %s1182 = ssub.s32 32, 32
      %1183 = vsyncadd [#allocation4], %s1182
      %s1185 = sshll.u32 [#allocation10], 4
      %s1186 = int_to_ptr.vmem [resolvable:$true] %s1185
      %1188 = dma.vmem_to_hbm [thread:$0]  %s1186, 32, %s4, [#allocation4]
    $region37: #{tpu_custom_call.1} parent=1 // pred_fallthru
      _
    // Predicated region
    $region38: #{tpu_custom_call.1} parent=1 // pred_check
      _
    $region39: #{tpu_custom_call.1} parent=1 // pred_check_branch
      %1190 = sbr.rel (0) target = $region41
    $region40: #{tpu_custom_call.1} parent=1 // pred_region
      %1191 = dma.done [#allocation4], 32
    $region41: #{tpu_custom_call.1} parent=1 // pred_fallthru
      _
    %1192 = vsyncpa [#allocation3], 1
    %1193 = vsyncpa [#allocation6], 1
    %1194 = vsyncpa [#allocation9], 1
    %1195 = vsyncpa [#allocation4], 1

</llo_original>
